<compile_context>
chip_gen: v5e
topology: v5e:2x2
jax: 0.10.0
libtpu: 0.0.40
codegen_flags: <defaults>
</compile_context>

<pallas_src>
import numpy as np
import jax
import jax.numpy as jnp
from jax.experimental import pallas as pl
from jax.experimental.pallas import tpu as pltpu


def _round_up(x, m):
    return ((x + m - 1) // m) * m


def _largest_divisor_leq(n, cap):
    for d in range(min(n, max(1, cap)), 0, -1):
        if n % d == 0:
            return d
    return 1


def _dft_matrices(H, W, Wfp):
    """Fused, zero-padded real-DFT matrices ('ortho'), bf16 for the MXU."""
    Wf = W // 2 + 1
    n = np.arange(W)
    k = np.arange(Wf)
    m = np.arange(H)

    # rfft along W (length W -> Wf):  y = x @ (fwr + i*fwi)
    ang_w = 2.0 * np.pi * (np.outer(n, k) % W) / W             # (W, Wf)
    fwr = np.cos(ang_w) / np.sqrt(W)
    fwi = -np.sin(ang_w) / np.sqrt(W)

    # full FFT along H (symmetric cos/sin matrices, shared by fwd / inv)
    ang_h = 2.0 * np.pi * (np.outer(m, m) % H) / H              # (H, H)
    ch = np.cos(ang_h) / np.sqrt(H)
    sh = np.sin(ang_h) / np.sqrt(H)

    # irfft along W (Wf -> W): Hermitian mirror + DC/Nyquist folded in
    ang_iw = 2.0 * np.pi * (np.outer(k, n) % W) / W             # (Wf, W)
    coef_r = np.full((Wf,), 2.0)
    coef_i = np.full((Wf,), 2.0)
    coef_r[0] = 1.0
    coef_i[0] = 0.0
    if W % 2 == 0:                                              # Nyquist bin
        coef_r[-1] = 1.0
        coef_i[-1] = 0.0
    mr = coef_r[:, None] * np.cos(ang_iw) / np.sqrt(W)
    mi = -coef_i[:, None] * np.sin(ang_iw) / np.sqrt(W)

    # Zero-pad the rfft frequency axis Wf -> Wfp (multiple of 8) so in-kernel
    # reshapes stay sublane-aligned; the padded bins are exactly zero.
    fwr_p = np.zeros((W, Wfp)); fwr_p[:, :Wf] = fwr
    fwi_p = np.zeros((W, Wfp)); fwi_p[:, :Wf] = fwi
    mr_p = np.zeros((Wfp, W)); mr_p[:Wf] = mr
    mi_p = np.zeros((Wfp, W)); mi_p[:Wf] = mi

    # Fused real/imag operators: one matmul per transform stage.
    fw2 = np.concatenate([fwr_p, fwi_p], axis=1)                # (W, 2*Wfp)
    qf = np.block([[ch, -sh], [sh, ch]])                        # (2H, 2H) fwd
    qi = np.block([[ch, sh], [-sh, ch]])                        # (2H, 2H) inv
    m2 = np.concatenate([mr_p, mi_p], axis=0)                   # (2*Wfp, W)

    return tuple(jnp.asarray(a, jnp.bfloat16) for a in (fw2, qf, qi, m2))


def _ffparser_kernel(x_ref, wr_ref, wi_ref, fw2_ref, qf_ref, qi_ref, m2_ref,
                     o_ref):
    # x_ref : (Ct, H, W)      Ct channels of one image (batch dim squeezed)
    # wr/wi : (Ct, Wfp, H)    spectral weight, pre-turned to (chan, freq_w, H)
    # fw2   : (W, 2*Wfp)  qf/qi : (2H, 2H)  m2 : (2*Wfp, W)   bf16 constants
    ct, H, W = x_ref.shape
    wfp = wr_ref.shape[1]

    # ---- rfft along W: ONE (Ct*H, W) @ (W, 2*Wfp) matmul (bf16, f32 acc) ----
    x2d = x_ref[...].reshape(ct * H, W).astype(jnp.bfloat16)
    y = jnp.dot(x2d, fw2_ref[...], preferred_element_type=jnp.float32)
    # y lanes: [yr(f) | yi(f)]

    # ---- turn to (chan*freq_w rows, H lanes): per-channel minor transpose ----
    y3 = y.reshape(ct, H, 2 * wfp)
    yr_t = jnp.swapaxes(y3[:, :, :wfp], 1, 2)           # (Ct, Wfp, H)
    yi_t = jnp.swapaxes(y3[:, :, wfp:], 1, 2)           # (Ct, Wfp, H)
    ycat = jnp.concatenate([yr_t, yi_t], axis=-1)       # (Ct, Wfp, 2H)
    ycat = ycat.reshape(ct * wfp, 2 * H).astype(jnp.bfloat16)

    # ---- forward FFT along H (real/imag fused): ONE matmul ----
    z = jnp.dot(ycat, qf_ref[...], preferred_element_type=jnp.float32)
    zr = z[:, :H]
    zi = z[:, H:]

    # ---- pointwise complex multiply with the learned weight (f32 on VPU) ----
    wr = wr_ref[...].reshape(ct * wfp, H)
    wi = wi_ref[...].reshape(ct * wfp, H)
    vr = zr * wr - zi * wi
    vi = zr * wi + zi * wr
    vcat = jnp.concatenate([vr, vi], axis=-1).astype(jnp.bfloat16)

    # ---- inverse FFT along H (fused): ONE matmul ----
    g = jnp.dot(vcat, qi_ref[...], preferred_element_type=jnp.float32)

    # ---- turn back to (chan*H rows, freq_w lanes) ----
    g3 = g.reshape(ct, wfp, 2 * H)
    gr_t = jnp.swapaxes(g3[:, :, :H], 1, 2)             # (Ct, H, Wfp)
    gi_t = jnp.swapaxes(g3[:, :, H:], 1, 2)             # (Ct, H, Wfp)
    gcat = jnp.concatenate([gr_t, gi_t], axis=-1)       # (Ct, H, 2*Wfp)
    gcat = gcat.reshape(ct * H, 2 * wfp).astype(jnp.bfloat16)

    # ---- irfft along W: ONE matmul, then a single slab store ----
    out2d = jnp.dot(gcat, m2_ref[...], preferred_element_type=jnp.float32)
    o_ref[...] = out2d.reshape(ct, H, W).astype(o_ref.dtype)


def ffparser(x, complex_weight, *, max_channels_per_step=64):
    """x: (B, C, H, W); complex_weight: (C, H, W//2+1, 2) float32."""
    B, C, H, W = x.shape
    assert H == W, 'height and width are not equal'
    # NOTE: the reference forward's `spatial_size` argument is unused in its math.
    Wf = W // 2 + 1
    assert complex_weight.shape == (C, H, Wf, 2)
    Wfp = _round_up(Wf, 8)

    # Spectral weights, pre-turned to the kernel's (channel, freq_w, H) layout
    # and zero-padded to Wfp (once, in f32, on the XLA side).
    wr_t = jnp.transpose(jnp.asarray(complex_weight[..., 0], jnp.float32), (0, 2, 1))
    wi_t = jnp.transpose(jnp.asarray(complex_weight[..., 1], jnp.float32), (0, 2, 1))
    pad = Wfp - Wf
    if pad:
        wr_t = jnp.pad(wr_t, ((0, 0), (0, pad), (0, 0)))
        wi_t = jnp.pad(wi_t, ((0, 0), (0, pad), (0, 0)))

    fw2, qf, qi, m2 = _dft_matrices(H, W, Wfp)

    # Channels per grid step: large enough that Ct*H / Ct*Wfp fill the MXU's
    # streamed M dimension, capped by a crude per-step VMEM budget, and kept
    # so the grid has >= 2 steps (two v7x TensorCores).
    per_chan_bytes = 4 * (4 * H * W                 # x + out blocks, double-buffered
                          + 4 * Wfp * H             # wr/wi blocks, double-buffered
                          + 14 * 2 * max(H, Wfp) * max(W, Wfp, H))  # live f32 temps
    vmem_budget = 24 * 1024 * 1024
    ct_cap = max(1, min(max_channels_per_step, vmem_budget // max(1, per_chan_bytes)))
    Ct = _largest_divisor_leq(C, ct_cap)
    if B * (C // Ct) < 2 and C > 1:
        Ct = _largest_divisor_leq(C, max(1, Ct // 2))
    grid = (C // Ct, B)   # batch innermost: weight blocks stay resident across B

    flops = B * C * (8 * H * W * Wfp + 16 * H * H * Wfp)
    bytes_accessed = (4 * (2 * B * C * H * W + 2 * C * Wfp * H)
                      + 2 * (W * 2 * Wfp + 2 * (2 * H) * (2 * H) + 2 * Wfp * W))

    out = pl.pallas_call(
        _ffparser_kernel,
        out_shape=jax.ShapeDtypeStruct((B, C, H, W), jnp.float32),
        grid_spec=pltpu.PrefetchScalarGridSpec(
            num_scalar_prefetch=0,
            grid=grid,
            in_specs=[
                pl.BlockSpec((None, Ct, H, W), lambda cb, b: (b, cb, 0, 0)),
                pl.BlockSpec((Ct, Wfp, H), lambda cb, b: (cb, 0, 0)),
                pl.BlockSpec((Ct, Wfp, H), lambda cb, b: (cb, 0, 0)),
                pl.BlockSpec((W, 2 * Wfp), lambda cb, b: (0, 0)),
                pl.BlockSpec((2 * H, 2 * H), lambda cb, b: (0, 0)),
                pl.BlockSpec((2 * H, 2 * H), lambda cb, b: (0, 0)),
                pl.BlockSpec((2 * Wfp, W), lambda cb, b: (0, 0)),
            ],
            out_specs=pl.BlockSpec((None, Ct, H, W), lambda cb, b: (b, cb, 0, 0)),
        ),
        compiler_params=pltpu.CompilerParams(
            dimension_semantics=("parallel", "parallel"),
            vmem_limit_bytes=32 * 1024 * 1024),
        cost_estimate=pl.CostEstimate(
            flops=flops, transcendentals=0, bytes_accessed=bytes_accessed),
    )(x, wr_t, wi_t, fw2, qf, qi, m2)
    return out


def ffparser_ref(x, complex_weight):
    """Pure-JAX reference matching the PyTorch forward."""
    B, C, H, W = x.shape
    w = complex_weight[..., 0] + 1j * complex_weight[..., 1]       # (C, H, Wf)
    xf = jnp.fft.rfft2(x.astype(jnp.float32), axes=(2, 3), norm='ortho')
    xf = xf * w[None]
    y = jnp.fft.irfft2(xf, s=(H, W), axes=(2, 3), norm='ortho')
    return y.reshape(B, C, H, W)


if __name__ == "__main__":
    B, C, H, W = 2, 4, 16, 16
    Wf = W // 2 + 1

    key = jax.random.PRNGKey(0)
    kx, kw = jax.random.split(key)
    x = jax.random.normal(kx, (B, C, H, W), dtype=jnp.float32)
    # Parameter as in the module: randn(dim, h, w, 2) * 0.02 with w = W//2+1.
    complex_weight = 0.02 * jax.random.normal(kw, (C, H, Wf, 2), dtype=jnp.float32)

    out = jax.block_until_ready(ffparser(x, complex_weight))
    ref = jax.block_until_ready(ffparser_ref(x, complex_weight))

    assert out.shape == x.shape
    max_err = float(jnp.max(jnp.abs(out - ref)))
    # Tolerance covers bf16 MXU operands (f32 accumulation) vs XLA's f32 FFT.
    assert jnp.allclose(out, ref, atol=3e-3, rtol=2e-2), f"max abs err {max_err}"
    print("KERNEL_OK")
</pallas_src>

<mosaic_0001>
module attributes {stable_mosaic.version = 11 : i64} {
  func.func @_ffparser_kernel(%arg0: i32, %arg1: i32, %arg2: memref<1x4x16x16xf32, #tpu.memory_space<vmem>>, %arg3: memref<4x16x16xf32, #tpu.memory_space<vmem>>, %arg4: memref<4x16x16xf32, #tpu.memory_space<vmem>>, %arg5: memref<16x32xbf16, #tpu.memory_space<vmem>>, %arg6: memref<32x32xbf16, #tpu.memory_space<vmem>>, %arg7: memref<32x32xbf16, #tpu.memory_space<vmem>>, %arg8: memref<32x16xbf16, #tpu.memory_space<vmem>>, %arg9: memref<1x4x16x16xf32, #tpu.memory_space<vmem>>) attributes {dimension_semantics = [#tpu.dimension_semantics<parallel>, #tpu.dimension_semantics<parallel>], iteration_bounds = array<i64: 1, 2>, scalar_prefetch = 0 : i64, scratch_operands = 0 : i64, tpu.core_type = #tpu.core_type<tc>, window_params = [{transform_indices = @transform_0, window_bounds = array<i64: 1, 4, 16, 16>}, {transform_indices = @transform_1, window_bounds = array<i64: 4, 16, 16>}, {transform_indices = @transform_2, window_bounds = array<i64: 4, 16, 16>}, {pipeline_mode = #tpu.pipeline_mode<synchronous>, transform_indices = @transform_3, window_bounds = array<i64: 16, 32>}, {pipeline_mode = #tpu.pipeline_mode<synchronous>, transform_indices = @transform_4, window_bounds = array<i64: 32, 32>}, {pipeline_mode = #tpu.pipeline_mode<synchronous>, transform_indices = @transform_5, window_bounds = array<i64: 32, 32>}, {pipeline_mode = #tpu.pipeline_mode<synchronous>, transform_indices = @transform_6, window_bounds = array<i64: 32, 16>}, {transform_indices = @transform_7, window_bounds = array<i64: 1, 4, 16, 16>}]} {
    %c0 = arith.constant 0 : index
    %c0_0 = arith.constant 0 : index
    %c0_1 = arith.constant 0 : index
    %c0_2 = arith.constant 0 : index
    %0 = vector.load %arg2[%c0, %c0_0, %c0_1, %c0_2] : memref<1x4x16x16xf32, #tpu.memory_space<vmem>>, vector<1x4x16x16xf32>
    %1 = vector.shape_cast %0 : vector<1x4x16x16xf32> to vector<4x16x16xf32>
    %2 = vector.shape_cast %1 : vector<4x16x16xf32> to vector<64x16xf32>
    %3 = arith.truncf %2 : vector<64x16xf32> to vector<64x16xbf16>
    %c0_3 = arith.constant 0 : index
    %c0_4 = arith.constant 0 : index
    %4 = vector.load %arg5[%c0_3, %c0_4] : memref<16x32xbf16, #tpu.memory_space<vmem>>, vector<16x32xbf16>
    %cst = arith.constant dense<0.000000e+00> : vector<64x32xf32>
    %5 = tpu.matmul %3, %4, %cst {dimension_numbers = #tpu.dot_dimension_numbers<[1], [0], [0], [1], [0, 0, 1, 1], [], []>} : vector<64x16xbf16>, vector<16x32xbf16>, vector<64x32xf32> -> vector<64x32xf32>
    %6 = vector.shape_cast %5 : vector<64x32xf32> to vector<4x16x32xf32>
    %7 = vector.extract_strided_slice %6 {offsets = [0, 0, 0], sizes = [4, 16, 16], strides = [1, 1, 1]} : vector<4x16x32xf32> to vector<4x16x16xf32>
    %8 = tpu.transpose %7, [0, 2, 1] : vector<4x16x16xf32> -> vector<4x16x16xf32>
    %9 = vector.extract_strided_slice %6 {offsets = [0, 0, 16], sizes = [4, 16, 16], strides = [1, 1, 1]} : vector<4x16x32xf32> to vector<4x16x16xf32>
    %10 = tpu.transpose %9, [0, 2, 1] : vector<4x16x16xf32> -> vector<4x16x16xf32>
    %11 = tpu.concatenate %8, %10 in 2 : vector<4x16x16xf32>, vector<4x16x16xf32> -> vector<4x16x32xf32>
    %12 = vector.shape_cast %11 : vector<4x16x32xf32> to vector<64x32xf32>
    %13 = arith.truncf %12 : vector<64x32xf32> to vector<64x32xbf16>
    %c0_5 = arith.constant 0 : index
    %c0_6 = arith.constant 0 : index
    %14 = vector.load %arg6[%c0_5, %c0_6] : memref<32x32xbf16, #tpu.memory_space<vmem>>, vector<32x32xbf16>
    %cst_7 = arith.constant dense<0.000000e+00> : vector<64x32xf32>
    %15 = tpu.matmul %13, %14, %cst_7 {dimension_numbers = #tpu.dot_dimension_numbers<[1], [0], [0], [1], [0, 0, 1, 1], [], []>} : vector<64x32xbf16>, vector<32x32xbf16>, vector<64x32xf32> -> vector<64x32xf32>
    %16 = vector.extract_strided_slice %15 {offsets = [0, 0], sizes = [64, 16], strides = [1, 1]} : vector<64x32xf32> to vector<64x16xf32>
    %17 = vector.extract_strided_slice %15 {offsets = [0, 16], sizes = [64, 16], strides = [1, 1]} : vector<64x32xf32> to vector<64x16xf32>
    %c0_8 = arith.constant 0 : index
    %c0_9 = arith.constant 0 : index
    %c0_10 = arith.constant 0 : index
    %18 = vector.load %arg3[%c0_8, %c0_9, %c0_10] : memref<4x16x16xf32, #tpu.memory_space<vmem>>, vector<4x16x16xf32>
    %19 = vector.shape_cast %18 : vector<4x16x16xf32> to vector<64x16xf32>
    %c0_11 = arith.constant 0 : index
    %c0_12 = arith.constant 0 : index
    %c0_13 = arith.constant 0 : index
    %20 = vector.load %arg4[%c0_11, %c0_12, %c0_13] : memref<4x16x16xf32, #tpu.memory_space<vmem>>, vector<4x16x16xf32>
    %21 = vector.shape_cast %20 : vector<4x16x16xf32> to vector<64x16xf32>
    %22 = arith.mulf %16, %19 : vector<64x16xf32>
    %23 = arith.mulf %17, %21 : vector<64x16xf32>
    %24 = arith.subf %22, %23 : vector<64x16xf32>
    %25 = arith.mulf %16, %21 : vector<64x16xf32>
    %26 = arith.mulf %17, %19 : vector<64x16xf32>
    %27 = arith.addf %25, %26 : vector<64x16xf32>
    %28 = tpu.concatenate %24, %27 in 1 : vector<64x16xf32>, vector<64x16xf32> -> vector<64x32xf32>
    %29 = arith.truncf %28 : vector<64x32xf32> to vector<64x32xbf16>
    %c0_14 = arith.constant 0 : index
    %c0_15 = arith.constant 0 : index
    %30 = vector.load %arg7[%c0_14, %c0_15] : memref<32x32xbf16, #tpu.memory_space<vmem>>, vector<32x32xbf16>
    %cst_16 = arith.constant dense<0.000000e+00> : vector<64x32xf32>
    %31 = tpu.matmul %29, %30, %cst_16 {dimension_numbers = #tpu.dot_dimension_numbers<[1], [0], [0], [1], [0, 0, 1, 1], [], []>} : vector<64x32xbf16>, vector<32x32xbf16>, vector<64x32xf32> -> vector<64x32xf32>
    %32 = vector.shape_cast %31 : vector<64x32xf32> to vector<4x16x32xf32>
    %33 = vector.extract_strided_slice %32 {offsets = [0, 0, 0], sizes = [4, 16, 16], strides = [1, 1, 1]} : vector<4x16x32xf32> to vector<4x16x16xf32>
    %34 = tpu.transpose %33, [0, 2, 1] : vector<4x16x16xf32> -> vector<4x16x16xf32>
    %35 = vector.extract_strided_slice %32 {offsets = [0, 0, 16], sizes = [4, 16, 16], strides = [1, 1, 1]} : vector<4x16x32xf32> to vector<4x16x16xf32>
    %36 = tpu.transpose %35, [0, 2, 1] : vector<4x16x16xf32> -> vector<4x16x16xf32>
    %37 = tpu.concatenate %34, %36 in 2 : vector<4x16x16xf32>, vector<4x16x16xf32> -> vector<4x16x32xf32>
    %38 = vector.shape_cast %37 : vector<4x16x32xf32> to vector<64x32xf32>
    %39 = arith.truncf %38 : vector<64x32xf32> to vector<64x32xbf16>
    %c0_17 = arith.constant 0 : index
    %c0_18 = arith.constant 0 : index
    %40 = vector.load %arg8[%c0_17, %c0_18] : memref<32x16xbf16, #tpu.memory_space<vmem>>, vector<32x16xbf16>
    %cst_19 = arith.constant dense<0.000000e+00> : vector<64x16xf32>
    %41 = tpu.matmul %39, %40, %cst_19 {dimension_numbers = #tpu.dot_dimension_numbers<[1], [0], [0], [1], [0, 0, 1, 1], [], []>} : vector<64x32xbf16>, vector<32x16xbf16>, vector<64x16xf32> -> vector<64x16xf32>
    %42 = vector.shape_cast %41 : vector<64x16xf32> to vector<4x16x16xf32>
    %c0_20 = arith.constant 0 : index
    %c0_21 = arith.constant 0 : index
    %c0_22 = arith.constant 0 : index
    %c0_23 = arith.constant 0 : index
    %43 = vector.load %arg9[%c0_20, %c0_21, %c0_22, %c0_23] : memref<1x4x16x16xf32, #tpu.memory_space<vmem>>, vector<1x4x16x16xf32>
    %44 = vector.shape_cast %43 : vector<1x4x16x16xf32> to vector<4x16x16xf32>
    %45 = vector.shape_cast %42 : vector<4x16x16xf32> to vector<1x4x16x16xf32>
    tpu.vector_store %arg9[%c0_20, %c0_21, %c0_22, %c0_23], %45 {strides = array<i32>} : memref<1x4x16x16xf32, #tpu.memory_space<vmem>>, vector<1x4x16x16xf32>,
    return
  }
  func.func @transform_0(%arg0: i32, %arg1: i32) -> (i32, i32, i32, i32) {
    %c0_i32 = arith.constant 0 : i32
    %c0_i32_0 = arith.constant 0 : i32
    %c0_i32_1 = arith.constant 0 : i32
    return %arg1, %arg0, %c0_i32, %c0_i32_0 : i32, i32, i32, i32
  }
  func.func @transform_1(%arg0: i32, %arg1: i32) -> (i32, i32, i32) {
    %c0_i32 = arith.constant 0 : i32
    %c0_i32_0 = arith.constant 0 : i32
    %c0_i32_1 = arith.constant 0 : i32
    return %arg0, %c0_i32, %c0_i32_0 : i32, i32, i32
  }
  func.func @transform_2(%arg0: i32, %arg1: i32) -> (i32, i32, i32) {
    %c0_i32 = arith.constant 0 : i32
    %c0_i32_0 = arith.constant 0 : i32
    %c0_i32_1 = arith.constant 0 : i32
    return %arg0, %c0_i32, %c0_i32_0 : i32, i32, i32
  }
  func.func @transform_3(%arg0: i32, %arg1: i32) -> (i32, i32) {
    %c0_i32 = arith.constant 0 : i32
    %c0_i32_0 = arith.constant 0 : i32
    %c0_i32_1 = arith.constant 0 : i32
    return %c0_i32, %c0_i32_0 : i32, i32
  }
  func.func @transform_4(%arg0: i32, %arg1: i32) -> (i32, i32) {
    %c0_i32 = arith.constant 0 : i32
    %c0_i32_0 = arith.constant 0 : i32
    %c0_i32_1 = arith.constant 0 : i32
    return %c0_i32, %c0_i32_0 : i32, i32
  }
  func.func @transform_5(%arg0: i32, %arg1: i32) -> (i32, i32) {
    %c0_i32 = arith.constant 0 : i32
    %c0_i32_0 = arith.constant 0 : i32
    %c0_i32_1 = arith.constant 0 : i32
    return %c0_i32, %c0_i32_0 : i32, i32
  }
  func.func @transform_6(%arg0: i32, %arg1: i32) -> (i32, i32) {
    %c0_i32 = arith.constant 0 : i32
    %c0_i32_0 = arith.constant 0 : i32
    %c0_i32_1 = arith.constant 0 : i32
    return %c0_i32, %c0_i32_0 : i32, i32
  }
  func.func @transform_7(%arg0: i32, %arg1: i32) -> (i32, i32, i32, i32) {
    %c0_i32 = arith.constant 0 : i32
    %c0_i32_0 = arith.constant 0 : i32
    %c0_i32_1 = arith.constant 0 : i32
    return %arg1, %arg0, %c0_i32, %c0_i32_0 : i32, i32, i32, i32
  }
}

</mosaic_0001>

<llo_original>
// kernel: tpu_custom_call.1
$region0: #{tpu_custom_call.1}
  #allocation0 [shape = 'u32[]', space=smem, size = 0x4, offset = 0x4, fixed_abs, tag = 'smem constant byte address 0x4 - core index']
  #allocation1 [shape = 'u32[72,128]{1,0:T(1,128)}', space=vmem, size = 0x9000, scoped, tag = 'internal scratch']
  %s0 = inlined_call_operand.hbm [shape: f32[2,4,16,16], index: 0, kind: input, shape index: {}]
  %s1 = inlined_call_operand.hbm [shape: f32[4,16,16], index: 1, kind: input, shape index: {}]
  %s2 = inlined_call_operand.hbm [shape: f32[4,16,16], index: 2, kind: input, shape index: {}]
  %s3 = inlined_call_operand.vmem [shape: bf16[16,32], index: 3, kind: input, shape index: {}]
  %s4 = inlined_call_operand.vmem [shape: bf16[32,32], index: 4, kind: input, shape index: {}]
  %s5 = inlined_call_operand.hbm [shape: bf16[32,32], index: 5, kind: input, shape index: {}]
  %s6 = inlined_call_operand.vmem [shape: bf16[32,16], index: 6, kind: input, shape index: {}]
  %s7 = inlined_call_operand.hbm [shape: f32[2,4,16,16], index: 7, kind: output, shape index: {}]
  %s8 = sld [smem:[#allocation0]]
  $region77: #{tpu_custom_call.1} parent=0
    _
  %s10 = ssub.s32 1, %s8
  %s11 = scalar_select 0, %s10, %s8
  $region1: #{tpu_custom_call.1} parent=0
    #allocation2 [shape = 'u8[65536]{0}', space=vmem, size = 0x10000, scoped, tag = 'input window, operand 0']
    #allocation3 [shape = 's32[2]{0}', space=sflag, size = 0x8, scoped, tag = 'scoped memory for tpu_custom_call.1']
    #allocation4 [shape = 's32[2]{0}', space=sflag, size = 0x8, scoped, tag = 'scoped memory for tpu_custom_call.1']
    #allocation5 [shape = 'u8[32768]{0}', space=vmem, size = 0x8000, scoped, tag = 'input window, operand 1, single buffered']
    #allocation6 [shape = 's32[1]{0}', space=sflag, size = 0x4, scoped, tag = 'scoped memory for tpu_custom_call.1']
    #allocation7 [shape = 'u8[32768]{0}', space=vmem, size = 0x8000, scoped, tag = 'input window, operand 2, single buffered']
    #allocation8 [shape = 'u8[8192]{0}', space=vmem, size = 0x2000, scoped, tag = 'input window, operand 5, single buffered']
    #allocation9 [shape = 's32[1]{0}', space=sflag, size = 0x4, scoped, tag = 'scoped memory for tpu_custom_call.1']
    #allocation10 [shape = 'u8[65536]{0}', space=vmem, size = 0x10000, scoped, tag = 'output window, operand 0']
    %12 = vsyncpa [#allocation3], 0
    %s13 = scalar_lea.sflag [#allocation3], 1
    %14 = vsyncpa %s13, 0
    %15 = vsyncpa [#allocation6], 0
    %16 = vsyncpa [#allocation9], 0
    %17 = vsyncpa [#allocation4], 0
    %s18 = scalar_lea.sflag [#allocation4], 1
    %19 = vsyncpa %s18, 0
    loop: start=0, step=1, limit=4
    $region2: #{tpu_custom_call.1} parent=1 // loop_pre_header
      _
    $region3: #{tpu_custom_call.1} parent=1 // loop_header
      %s21 = sphi 0, %s25
      %p22 = scmp.ge.s32.totalorder %s21, 4
      %s28 = sphi 0, %s40
      %s29 = sphi 0, %s36
      %s30 = sphi 0, %s28
      %s31 = sphi 0, %s29
      %s32 = sphi 0, %s30
      %s33 = sphi 0, %s31
      %s45 = sphi 0, %s47
      %s48 = sphi 0, %s45
      %s49 = sphi 0, %s48
      %s65 = sphi 0, %s49
      %s71 = sphi 0, %s73
      %s74 = sphi 0, %s71
      %s75 = sphi 0, %s74
      %s91 = sphi 0, %s75
      %s97 = sphi 0, %s99
      %s100 = sphi 0, %s97
      %s101 = sphi 0, %s100
      %s117 = sphi 0, %s101
      %s121 = sphi 0, %s121
      %s123 = sphi 0, %s121
      %s124 = sphi 0, %s123
      %s138 = sphi 0, %s124
      %s142 = sphi 0, %s142
      %s144 = sphi 0, %s142
      %s145 = sphi 0, %s144
      %s159 = sphi 0, %s145
      %s163 = sphi 0, %s163
      %s165 = sphi 0, %s163
      %s166 = sphi 0, %s165
      %s180 = sphi 0, %s166
      %s184 = sphi 0, %s184
      %s186 = sphi 0, %s184
      %s187 = sphi 0, %s186
      %s201 = sphi 0, %s187
      %s209 = sphi 0, %s211
      %s212 = sphi 0, %s209
      %s213 = sphi 0, %s212
      %s229 = sphi 0, %s213
    $region4: #{tpu_custom_call.1} parent=1 // loop_header_branch
      %24 = sbr.rel (%p22) target = $region8
    $region5: #{tpu_custom_call.1} parent=1 // loop_body
      %s26 = ssub.s32 %s21, 1
      %s27 = ssub.s32 %s21, 2
      %s34 = sadd.s32 1, %s29
      %p35 = scmp.ge.s32.totalorder %s34, 2
      %s36 = scalar_select %p35, 0, %s34
      %s37 = sadd.s32 1, %s28
      %s38 = scalar_select %p35, %s37, %s28
      %p39 = scmp.ge.s32.totalorder %s38, 1
      %s40 = scalar_select %p39, 0, %s38
      %s41 = ssub.s32 %s29, %s36
      %s42 = ssub.s32 %s28, %s40
      %s43 = sor.u32 %s41, %s42
      %p44 = scmp.eq.s32.totalorder %s43, 0
      %s46 = sadd.s32 %s45, 1
      %s47 = scalar_select %p44, %s45, %s46
      %p50 = pneg %p44
      %p51 = scmp.eq.s32.totalorder %s21, 1
      %p52 = por %p50, %p51
      %p53 = scmp.ne.s32.totalorder %s45, %s48
      %p54 = scmp.eq.s32.totalorder %s21, 0
      %p55 = por %p53, %p54
      %p56 = scmp.ne.s32.totalorder %s45, %s48
      %p57 = scmp.eq.s32.totalorder %s26, 1
      %p58 = por %p56, %p57
      %p59 = scmp.ne.s32.totalorder %s48, %s49
      %p60 = scmp.eq.s32.totalorder %s26, 0
      %p61 = por %p59, %p60
      %p62 = scmp.ne.s32.totalorder %s48, %s49
      %p63 = scmp.eq.s32.totalorder %s27, 1
      %p64 = por %p62, %p63
      %p66 = scmp.ne.s32.totalorder %s49, %s65
      %p67 = scmp.eq.s32.totalorder %s27, 0
      %p68 = por %p66, %p67
      %s69 = ssub.s32 %s28, %s40
      %p70 = scmp.eq.s32.totalorder %s69, 0
      %s72 = sadd.s32 %s71, 1
      %s73 = scalar_select %p70, %s71, %s72
      %p76 = pneg %p70
      %p77 = scmp.eq.s32.totalorder %s21, 1
      %p78 = por %p76, %p77
      %p79 = scmp.ne.s32.totalorder %s71, %s74
      %p80 = scmp.eq.s32.totalorder %s21, 0
      %p81 = por %p79, %p80
      %p82 = scmp.ne.s32.totalorder %s71, %s74
      %p83 = scmp.eq.s32.totalorder %s26, 1
      %p84 = por %p82, %p83
      %p85 = scmp.ne.s32.totalorder %s74, %s75
      %p86 = scmp.eq.s32.totalorder %s26, 0
      %p87 = por %p85, %p86
      %p88 = scmp.ne.s32.totalorder %s74, %s75
      %p89 = scmp.eq.s32.totalorder %s27, 1
      %p90 = por %p88, %p89
      %p92 = scmp.ne.s32.totalorder %s75, %s91
      %p93 = scmp.eq.s32.totalorder %s27, 0
      %p94 = por %p92, %p93
      %s95 = ssub.s32 %s28, %s40
      %p96 = scmp.eq.s32.totalorder %s95, 0
      %s98 = sadd.s32 %s97, 1
      %s99 = scalar_select %p96, %s97, %s98
      %p102 = pneg %p96
      %p103 = scmp.eq.s32.totalorder %s21, 1
      %p104 = por %p102, %p103
      %p105 = scmp.ne.s32.totalorder %s97, %s100
      %p106 = scmp.eq.s32.totalorder %s21, 0
      %p107 = por %p105, %p106
      %p108 = scmp.ne.s32.totalorder %s97, %s100
      %p109 = scmp.eq.s32.totalorder %s26, 1
      %p110 = por %p108, %p109
      %p111 = scmp.ne.s32.totalorder %s100, %s101
      %p112 = scmp.eq.s32.totalorder %s26, 0
      %p113 = por %p111, %p112
      %p114 = scmp.ne.s32.totalorder %s100, %s101
      %p115 = scmp.eq.s32.totalorder %s27, 1
      %p116 = por %p114, %p115
      %p118 = scmp.ne.s32.totalorder %s101, %s117
      %p119 = scmp.eq.s32.totalorder %s27, 0
      %p120 = por %p118, %p119
      %s122 = sadd.s32 %s121, 1
      %p125 = scmp.eq.s32.totalorder %s21, 1
      %p126 = scmp.ne.s32.totalorder %s121, %s123
      %p127 = scmp.eq.s32.totalorder %s21, 0
      %p128 = por %p126, %p127
      %p129 = scmp.ne.s32.totalorder %s121, %s123
      %p130 = scmp.eq.s32.totalorder %s26, 1
      %p131 = por %p129, %p130
      %p132 = scmp.ne.s32.totalorder %s123, %s124
      %p133 = scmp.eq.s32.totalorder %s26, 0
      %p134 = por %p132, %p133
      %p135 = scmp.ne.s32.totalorder %s123, %s124
      %p136 = scmp.eq.s32.totalorder %s27, 1
      %p137 = por %p135, %p136
      %p139 = scmp.ne.s32.totalorder %s124, %s138
      %p140 = scmp.eq.s32.totalorder %s27, 0
      %p141 = por %p139, %p140
      %s143 = sadd.s32 %s142, 1
      %p146 = scmp.eq.s32.totalorder %s21, 1
      %p147 = scmp.ne.s32.totalorder %s142, %s144
      %p148 = scmp.eq.s32.totalorder %s21, 0
      %p149 = por %p147, %p148
      %p150 = scmp.ne.s32.totalorder %s142, %s144
      %p151 = scmp.eq.s32.totalorder %s26, 1
      %p152 = por %p150, %p151
      %p153 = scmp.ne.s32.totalorder %s144, %s145
      %p154 = scmp.eq.s32.totalorder %s26, 0
      %p155 = por %p153, %p154
      %p156 = scmp.ne.s32.totalorder %s144, %s145
      %p157 = scmp.eq.s32.totalorder %s27, 1
      %p158 = por %p156, %p157
      %p160 = scmp.ne.s32.totalorder %s145, %s159
      %p161 = scmp.eq.s32.totalorder %s27, 0
      %p162 = por %p160, %p161
      %s164 = sadd.s32 %s163, 1
      %p167 = scmp.eq.s32.totalorder %s21, 1
      %p168 = scmp.ne.s32.totalorder %s163, %s165
      %p169 = scmp.eq.s32.totalorder %s21, 0
      %p170 = por %p168, %p169
      %p171 = scmp.ne.s32.totalorder %s163, %s165
      %p172 = scmp.eq.s32.totalorder %s26, 1
      %p173 = por %p171, %p172
      %p174 = scmp.ne.s32.totalorder %s165, %s166
      %p175 = scmp.eq.s32.totalorder %s26, 0
      %p176 = por %p174, %p175
      %p177 = scmp.ne.s32.totalorder %s165, %s166
      %p178 = scmp.eq.s32.totalorder %s27, 1
      %p179 = por %p177, %p178
      %p181 = scmp.ne.s32.totalorder %s166, %s180
      %p182 = scmp.eq.s32.totalorder %s27, 0
      %p183 = por %p181, %p182
      %s185 = sadd.s32 %s184, 1
      %p188 = scmp.eq.s32.totalorder %s21, 1
      %p189 = scmp.ne.s32.totalorder %s184, %s186
      %p190 = scmp.eq.s32.totalorder %s21, 0
      %p191 = por %p189, %p190
      %p192 = scmp.ne.s32.totalorder %s184, %s186
      %p193 = scmp.eq.s32.totalorder %s26, 1
      %p194 = por %p192, %p193
      %p195 = scmp.ne.s32.totalorder %s186, %s187
      %p196 = scmp.eq.s32.totalorder %s26, 0
      %p197 = por %p195, %p196
      %p198 = scmp.ne.s32.totalorder %s186, %s187
      %p199 = scmp.eq.s32.totalorder %s27, 1
      %p200 = por %p198, %p199
      %p202 = scmp.ne.s32.totalorder %s187, %s201
      %p203 = scmp.eq.s32.totalorder %s27, 0
      %p204 = por %p202, %p203
      %s205 = ssub.s32 %s29, %s36
      %s206 = ssub.s32 %s28, %s40
      %s207 = sor.u32 %s205, %s206
      %p208 = scmp.eq.s32.totalorder %s207, 0
      %s210 = sadd.s32 %s209, 1
      %s211 = scalar_select %p208, %s209, %s210
      %p214 = pneg %p208
      %p215 = scmp.eq.s32.totalorder %s21, 1
      %p216 = por %p214, %p215
      %p217 = scmp.ne.s32.totalorder %s209, %s212
      %p218 = scmp.eq.s32.totalorder %s21, 0
      %p219 = por %p217, %p218
      %p220 = scmp.ne.s32.totalorder %s209, %s212
      %p221 = scmp.eq.s32.totalorder %s26, 1
      %p222 = por %p220, %p221
      %p223 = scmp.ne.s32.totalorder %s212, %s213
      %p224 = scmp.eq.s32.totalorder %s26, 0
      %p225 = por %p223, %p224
      %p226 = scmp.ne.s32.totalorder %s212, %s213
      %p227 = scmp.eq.s32.totalorder %s27, 1
      %p228 = por %p226, %p227
      %p230 = scmp.ne.s32.totalorder %s213, %s229
      %p231 = scmp.eq.s32.totalorder %s27, 0
      %p232 = por %p230, %p231
      %p233 = scmp.le.s32.totalorder 1, %s21
      %p234 = scmp.lt.s32.totalorder %s21, 3
      %p235 = pnand %p233, %p234
      %p236 = pneg %p235
      // Predicated region
      $region9: #{tpu_custom_call.1} parent=5 // pred_check
        _
      $region10: #{tpu_custom_call.1} parent=5 // pred_check_branch
        %238 = sbr.rel (%p235) target = $region12
      $region11: #{tpu_custom_call.1} parent=5 // pred_region
        %s239 = ssub.s32 %s21, 1
        // Predicated region
        $region13: #{tpu_custom_call.1} parent=11 // pred_check
          %p240 = pneg %p87
        $region14: #{tpu_custom_call.1} parent=11 // pred_check_branch
          %242 = sbr.rel (%p240) target = $region16
        $region15: #{tpu_custom_call.1} parent=11 // pred_region
          %s243 = smul.u32 4, %s30
          %245 = vsyncadd [#allocation6], 0
          %s246 = smul.addr %s243, 2
          %s247 = smul.addr %s246, 8
          %s248 = scalar_lea.hbm %s1, %s247
          %s249 = sshll.u32 %s248, 4
          %s250 = int_to_ptr.hbm [resolvable:$true] %s249
          %s251 = sshll.u32 [#allocation5], 4
          %s252 = int_to_ptr.vmem [resolvable:$true] %s251
          %257 = dma.hbm_to_vmem [thread:$0]  %s250, 1024, %s252, [#allocation6], 128, 128, 8
        $region16: #{tpu_custom_call.1} parent=11 // pred_fallthru
          _
        // Predicated region
        $region17: #{tpu_custom_call.1} parent=11 // pred_check
          %p258 = pneg %p113
        $region18: #{tpu_custom_call.1} parent=11 // pred_check_branch
          %260 = sbr.rel (%p258) target = $region20
        $region19: #{tpu_custom_call.1} parent=11 // pred_region
          %s261 = smul.u32 4, %s30
          %263 = vsyncadd [#allocation6], 0
          %s264 = smul.addr %s261, 2
          %s265 = smul.addr %s264, 8
          %s266 = scalar_lea.hbm %s2, %s265
          %s267 = sshll.u32 %s266, 4
          %s268 = int_to_ptr.hbm [resolvable:$true] %s267
          %s269 = sshll.u32 [#allocation7], 4
          %s270 = int_to_ptr.vmem [resolvable:$true] %s269
          %275 = dma.hbm_to_vmem [thread:$0]  %s268, 1024, %s270, [#allocation6], 128, 128, 8
        $region20: #{tpu_custom_call.1} parent=11 // pred_fallthru
          _
        // Predicated region
        $region21: #{tpu_custom_call.1} parent=11 // pred_check
          %p276 = pneg %p134
        $region22: #{tpu_custom_call.1} parent=11 // pred_check_branch
          %278 = sbr.rel (%p276) target = $region24
        $region23: #{tpu_custom_call.1} parent=11 // pred_region
          _
        $region24: #{tpu_custom_call.1} parent=11 // pred_fallthru
          _
        // Predicated region
        $region25: #{tpu_custom_call.1} parent=11 // pred_check
          %p279 = pneg %p155
        $region26: #{tpu_custom_call.1} parent=11 // pred_check_branch
          %281 = sbr.rel (%p279) target = $region28
        $region27: #{tpu_custom_call.1} parent=11 // pred_region
          _
        $region28: #{tpu_custom_call.1} parent=11 // pred_fallthru
          _
        // Predicated region
        $region29: #{tpu_custom_call.1} parent=11 // pred_check
          %p282 = pneg %p176
        $region30: #{tpu_custom_call.1} parent=11 // pred_check_branch
          %284 = sbr.rel (%p282) target = $region32
        $region31: #{tpu_custom_call.1} parent=11 // pred_region
          %286 = vsyncadd [#allocation9], 0
          %s287 = sshll.u32 %s5, 4
          %s288 = int_to_ptr.hbm [resolvable:$true] %s287
          %s289 = sshll.u32 [#allocation8], 4
          %s290 = int_to_ptr.vmem [resolvable:$true] %s289
          %295 = dma.hbm_to_vmem [thread:$0]  %s288, 256, %s290, [#allocation9], 64, 64, 4
        $region32: #{tpu_custom_call.1} parent=11 // pred_fallthru
          _
        // Predicated region
        $region33: #{tpu_custom_call.1} parent=11 // pred_check
          %p296 = pneg %p197
        $region34: #{tpu_custom_call.1} parent=11 // pred_check_branch
          %298 = sbr.rel (%p296) target = $region36
        $region35: #{tpu_custom_call.1} parent=11 // pred_region
          _
        $region36: #{tpu_custom_call.1} parent=11 // pred_fallthru
          _
      $region12: #{tpu_custom_call.1} parent=5 // pred_fallthru
        _
      %p299 = scmp.lt.s32.totalorder %s21, 2
      // Predicated region
      $region37: #{tpu_custom_call.1} parent=5 // pred_check
        %p300 = pneg %p299
      $region38: #{tpu_custom_call.1} parent=5 // pred_check_branch
        %302 = sbr.rel (%p300) target = $region40
      $region39: #{tpu_custom_call.1} parent=5 // pred_region
        // Predicated region
        $region41: #{tpu_custom_call.1} parent=39 // pred_check
          %p303 = pneg %p55
        $region42: #{tpu_custom_call.1} parent=39 // pred_check_branch
          %305 = sbr.rel (%p303) target = $region44
        $region43: #{tpu_custom_call.1} parent=39 // pred_region
          %s306 = sand.u32 %s45, 1
          %s307 = scalar_lea.sflag [#allocation3], %s306
          %s308 = sand.u32 %s45, 1
          %s309 = smul.addr %s308, 64
          %s310 = scalar_lea.vmem [#allocation2], %s309
          %s311 = smul.u32 4, %s28
          %313 = vsyncadd %s307, 0
          %s314 = smul.addr %s311, 2
          %s315 = smul.addr %s29, 8
          %s316 = sadd.s32 %s314, %s315
          %s317 = smul.addr %s316, 8
          %s318 = scalar_lea.hbm %s0, %s317
          %s319 = sshll.u32 %s318, 4
          %s320 = int_to_ptr.hbm [resolvable:$true] %s319
          %s321 = sshll.u32 %s310, 4
          %s322 = int_to_ptr.vmem [resolvable:$true] %s321
          %327 = dma.hbm_to_vmem [thread:$0]  %s320, 1024, %s322, %s307, 128, 128, 8
        $region44: #{tpu_custom_call.1} parent=39 // pred_fallthru
          _
      $region40: #{tpu_custom_call.1} parent=5 // pred_fallthru
        _
      %p328 = scmp.le.s32.totalorder 1, %s21
      %p329 = scmp.lt.s32.totalorder %s21, 3
      %p330 = pnand %p328, %p329
      %p331 = pneg %p330
      // Predicated region
      $region45: #{tpu_custom_call.1} parent=5 // pred_check
        _
      $region46: #{tpu_custom_call.1} parent=5 // pred_check_branch
        %333 = sbr.rel (%p330) target = $region48
      $region47: #{tpu_custom_call.1} parent=5 // pred_region
        %s334 = ssub.s32 %s21, 1
        %s335 = sand.u32 %s48, 1
        %s336 = scalar_lea.sflag [#allocation3], %s335
        %s337 = sand.u32 %s48, 1
        %s338 = smul.addr %s337, 64
        %s339 = scalar_lea.vmem [#allocation2], %s338
        // Predicated region
        $region49: #{tpu_custom_call.1} parent=47 // pred_check
          %p340 = pneg %p61
        $region50: #{tpu_custom_call.1} parent=47 // pred_check_branch
          %342 = sbr.rel (%p340) target = $region52
        $region51: #{tpu_custom_call.1} parent=47 // pred_region
          %344 = dma.done %s336, 1024
        $region52: #{tpu_custom_call.1} parent=47 // pred_fallthru
          _
        // Predicated region
        $region53: #{tpu_custom_call.1} parent=47 // pred_check
          %p345 = pneg %p87
        $region54: #{tpu_custom_call.1} parent=47 // pred_check_branch
          %347 = sbr.rel (%p345) target = $region56
        $region55: #{tpu_custom_call.1} parent=47 // pred_region
          %349 = dma.done [#allocation6], 1024
        $region56: #{tpu_custom_call.1} parent=47 // pred_fallthru
          _
        // Predicated region
        $region57: #{tpu_custom_call.1} parent=47 // pred_check
          %p350 = pneg %p113
        $region58: #{tpu_custom_call.1} parent=47 // pred_check_branch
          %352 = sbr.rel (%p350) target = $region60
        $region59: #{tpu_custom_call.1} parent=47 // pred_region
          %354 = dma.done [#allocation6], 1024
        $region60: #{tpu_custom_call.1} parent=47 // pred_fallthru
          _
        // Predicated region
        $region61: #{tpu_custom_call.1} parent=47 // pred_check
          %p355 = pneg %p176
        $region62: #{tpu_custom_call.1} parent=47 // pred_check_branch
          %357 = sbr.rel (%p355) target = $region64
        $region63: #{tpu_custom_call.1} parent=47 // pred_region
          %359 = dma.done [#allocation9], 256
        $region64: #{tpu_custom_call.1} parent=47 // pred_fallthru
          _
        %s360 = sand.u32 %s48, 1
        %s361 = scalar_lea.sflag [#allocation3], %s360
        %s362 = sand.u32 %s48, 1
        %s363 = smul.addr %s362, 64
        %s364 = scalar_lea.vmem [#allocation2], %s363
        %p365 = pneg %p61
        %p366 = pneg %p58
        %p367 = pneg %p87
        %p368 = pneg %p84
        %p369 = pneg %p113
        %p370 = pneg %p110
        %p371 = pneg %p134
        %p372 = pneg %p131
        %p373 = pneg %p155
        %p374 = pneg %p152
        %p375 = pneg %p176
        %p376 = pneg %p173
        %p377 = pneg %p197
        %p378 = pneg %p194
        %p379 = pneg %p225
        %p380 = pneg %p222
        %s381 = sand.u32 %s212, 1
        %s382 = scalar_lea.sflag [#allocation4], %s381
        %s383 = sand.u32 %s212, 1
        %s384 = smul.addr %s383, 64
        %s385 = scalar_lea.vmem [#allocation10], %s384
        %s386 = smul.u32 4, %s30
        %s387 = smul.u32 4, %s30
        %s388 = smul.u32 4, %s30
        %s389 = smul.u32 4, %s30
        %v391 = vld [vmem:[%s339] sm:$0xff]
        %v392 = vld [vmem:[%s339 + $0x8] sm:$0xff]
        %v393 = vld [vmem:[%s339 + $0x10] sm:$0xff]
        %v394 = vld [vmem:[%s339 + $0x18] sm:$0xff]
        %v395 = vld [vmem:[%s339 + $0x20] sm:$0xff]
        %v396 = vld [vmem:[%s339 + $0x28] sm:$0xff]
        %v397 = vld [vmem:[%s339 + $0x30] sm:$0xff]
        %v398 = vld [vmem:[%s339 + $0x38] sm:$0xff]
        %v399 = vpack.c.bf16 %v392, %v391
        %v400 = vpack.c.bf16 %v394, %v393
        %v401 = vpack.c.bf16 %v396, %v395
        %v402 = vpack.c.bf16 %v398, %v397
        %v403 = vld [vmem:[%s3] sm:$0xf]
        %v404 = vld [vmem:[%s3 + $0x4] sm:$0xf]
        %v407 = vunpack.c.l.b16 %v403
        %v408 = vunpack.c.l.b16 %v404
        %v409 = vpack.c.b16 %v408, %v407
        %vm411 = vcmask 130048
        %v413 = vsel %vm411, %v399, 0
        %v416 = vsel %vm411, %v400, 0
        %v419 = vsel %vm411, %v401, 0
        %v422 = vsel %vm411, %v402, 0
        %424 = vmatpush.bf16.msra.mxu0 0
        %425 = vmatpush.bf16.msra.mxu0 0
        %426 = vmatpush.bf16.msra.mxu0 0
        %427 = vmatpush.bf16.msra.mxu0 0
        %428 = vmatpush.bf16.msra.mxu0 0
        %429 = vmatpush.bf16.msra.mxu0 0
        %430 = vmatpush.bf16.msra.mxu0 0
        %431 = vmatpush.bf16.msra.mxu0 %v409
        %432 = vmatmul.bf16.gmra.mxu0 %v413
        %v433 = vpop.f32.mrf.mxu0
        %v434 = vadd.f32 0.0, %v433
        %v435 = vpop.f32.mrf.mxu0
        %v436 = vadd.f32 0.0, %v435
        %437 = vmatmul.bf16.gmra.mxu0 %v416
        %v438 = vpop.f32.mrf.mxu0
        %v439 = vadd.f32 0.0, %v438
        %v440 = vpop.f32.mrf.mxu0
        %v441 = vadd.f32 0.0, %v440
        %442 = vmatmul.bf16.gmra.mxu0 %v419
        %v443 = vpop.f32.mrf.mxu0
        %v444 = vadd.f32 0.0, %v443
        %v445 = vpop.f32.mrf.mxu0
        %v446 = vadd.f32 0.0, %v445
        %447 = vmatmul.bf16.gmra.mxu0 %v422
        %v448 = vpop.f32.mrf.mxu0
        %v449 = vadd.f32 0.0, %v448
        %v450 = vpop.f32.mrf.mxu0
        %v451 = vadd.f32 0.0, %v450
        %452 = vdwg.mxu0
        %453 = vxpose.xlu0.b32.start [1/16] %v434, 128
        %454 = vxpose.xlu0.b32.cont [2/16] %v436, 128
        %455 = vxpose.xlu0.b32.cont [3/16] 0.0, 128
        %456 = vxpose.xlu0.b32.cont [4/16] 0.0, 128
        %457 = vxpose.xlu0.b32.cont [5/16] 0.0, 128
        %458 = vxpose.xlu0.b32.cont [6/16] 0.0, 128
        %459 = vxpose.xlu0.b32.cont [7/16] 0.0, 128
        %460 = vxpose.xlu0.b32.cont [8/16] 0.0, 128
        %461 = vxpose.xlu0.b32.cont [9/16] 0.0, 128
        %462 = vxpose.xlu0.b32.cont [10/16] 0.0, 128
        %463 = vxpose.xlu0.b32.cont [11/16] 0.0, 128
        %464 = vxpose.xlu0.b32.cont [12/16] 0.0, 128
        %465 = vxpose.xlu0.b32.cont [13/16] 0.0, 128
        %466 = vxpose.xlu0.b32.cont [14/16] 0.0, 128
        %467 = vxpose.xlu0.b32.cont [15/16] 0.0, 128
        %468 = vxpose.xlu0.b32.end [16/16] 0.0, 128
        %v469 = vpop.trf.xlu0
        %v470 = vpop.trf.xlu0
        %v471 = vpop.trf.xlu0
        %v472 = vpop.trf.xlu0
        %v473 = vpop.trf.xlu0
        %v474 = vpop.trf.xlu0
        %v475 = vpop.trf.xlu0
        %v476 = vpop.trf.xlu0
        %v477 = vpop.trf.xlu0
        %v478 = vpop.trf.xlu0
        %v479 = vpop.trf.xlu0
        %v480 = vpop.trf.xlu0
        %v481 = vpop.trf.xlu0
        %v482 = vpop.trf.xlu0
        %v483 = vpop.trf.xlu0
        %v484 = vpop.trf.xlu0
        %485 = vxpose.xlu0.b32.start [1/16] %v439, 128
        %486 = vxpose.xlu0.b32.cont [2/16] %v441, 128
        %487 = vxpose.xlu0.b32.cont [3/16] 0.0, 128
        %488 = vxpose.xlu0.b32.cont [4/16] 0.0, 128
        %489 = vxpose.xlu0.b32.cont [5/16] 0.0, 128
        %490 = vxpose.xlu0.b32.cont [6/16] 0.0, 128
        %491 = vxpose.xlu0.b32.cont [7/16] 0.0, 128
        %492 = vxpose.xlu0.b32.cont [8/16] 0.0, 128
        %493 = vxpose.xlu0.b32.cont [9/16] 0.0, 128
        %494 = vxpose.xlu0.b32.cont [10/16] 0.0, 128
        %495 = vxpose.xlu0.b32.cont [11/16] 0.0, 128
        %496 = vxpose.xlu0.b32.cont [12/16] 0.0, 128
        %497 = vxpose.xlu0.b32.cont [13/16] 0.0, 128
        %498 = vxpose.xlu0.b32.cont [14/16] 0.0, 128
        %499 = vxpose.xlu0.b32.cont [15/16] 0.0, 128
        %500 = vxpose.xlu0.b32.end [16/16] 0.0, 128
        %v501 = vpop.trf.xlu0
        %v502 = vpop.trf.xlu0
        %v503 = vpop.trf.xlu0
        %v504 = vpop.trf.xlu0
        %v505 = vpop.trf.xlu0
        %v506 = vpop.trf.xlu0
        %v507 = vpop.trf.xlu0
        %v508 = vpop.trf.xlu0
        %v509 = vpop.trf.xlu0
        %v510 = vpop.trf.xlu0
        %v511 = vpop.trf.xlu0
        %v512 = vpop.trf.xlu0
        %v513 = vpop.trf.xlu0
        %v514 = vpop.trf.xlu0
        %v515 = vpop.trf.xlu0
        %v516 = vpop.trf.xlu0
        %517 = vxpose.xlu0.b32.start [1/16] %v444, 128
        %518 = vxpose.xlu0.b32.cont [2/16] %v446, 128
        %519 = vxpose.xlu0.b32.cont [3/16] 0.0, 128
        %520 = vxpose.xlu0.b32.cont [4/16] 0.0, 128
        %521 = vxpose.xlu0.b32.cont [5/16] 0.0, 128
        %522 = vxpose.xlu0.b32.cont [6/16] 0.0, 128
        %523 = vxpose.xlu0.b32.cont [7/16] 0.0, 128
        %524 = vxpose.xlu0.b32.cont [8/16] 0.0, 128
        %525 = vxpose.xlu0.b32.cont [9/16] 0.0, 128
        %526 = vxpose.xlu0.b32.cont [10/16] 0.0, 128
        %527 = vxpose.xlu0.b32.cont [11/16] 0.0, 128
        %528 = vxpose.xlu0.b32.cont [12/16] 0.0, 128
        %529 = vxpose.xlu0.b32.cont [13/16] 0.0, 128
        %530 = vxpose.xlu0.b32.cont [14/16] 0.0, 128
        %531 = vxpose.xlu0.b32.cont [15/16] 0.0, 128
        %532 = vxpose.xlu0.b32.end [16/16] 0.0, 128
        %v533 = vpop.trf.xlu0
        %v534 = vpop.trf.xlu0
        %v535 = vpop.trf.xlu0
        %v536 = vpop.trf.xlu0
        %v537 = vpop.trf.xlu0
        %v538 = vpop.trf.xlu0
        %v539 = vpop.trf.xlu0
        %v540 = vpop.trf.xlu0
        %v541 = vpop.trf.xlu0
        %v542 = vpop.trf.xlu0
        %v543 = vpop.trf.xlu0
        %v544 = vpop.trf.xlu0
        %v545 = vpop.trf.xlu0
        %v546 = vpop.trf.xlu0
        %v547 = vpop.trf.xlu0
        %v548 = vpop.trf.xlu0
        %549 = vxpose.xlu0.b32.start [1/16] %v449, 128
        %550 = vxpose.xlu0.b32.cont [2/16] %v451, 128
        %551 = vxpose.xlu0.b32.cont [3/16] 0.0, 128
        %552 = vxpose.xlu0.b32.cont [4/16] 0.0, 128
        %553 = vxpose.xlu0.b32.cont [5/16] 0.0, 128
        %554 = vxpose.xlu0.b32.cont [6/16] 0.0, 128
        %555 = vxpose.xlu0.b32.cont [7/16] 0.0, 128
        %556 = vxpose.xlu0.b32.cont [8/16] 0.0, 128
        %557 = vxpose.xlu0.b32.cont [9/16] 0.0, 128
        %558 = vxpose.xlu0.b32.cont [10/16] 0.0, 128
        %559 = vxpose.xlu0.b32.cont [11/16] 0.0, 128
        %560 = vxpose.xlu0.b32.cont [12/16] 0.0, 128
        %561 = vxpose.xlu0.b32.cont [13/16] 0.0, 128
        %562 = vxpose.xlu0.b32.cont [14/16] 0.0, 128
        %563 = vxpose.xlu0.b32.cont [15/16] 0.0, 128
        %564 = vxpose.xlu0.b32.end [16/16] 0.0, 128
        %v565 = vpop.trf.xlu0
        %v566 = vpop.trf.xlu0
        %v567 = vpop.trf.xlu0
        %v568 = vpop.trf.xlu0
        %v569 = vpop.trf.xlu0
        %v570 = vpop.trf.xlu0
        %v571 = vpop.trf.xlu0
        %v572 = vpop.trf.xlu0
        %v573 = vpop.trf.xlu0
        %v574 = vpop.trf.xlu0
        %v575 = vpop.trf.xlu0
        %v576 = vpop.trf.xlu0
        %v577 = vpop.trf.xlu0
        %v578 = vpop.trf.xlu0
        %v579 = vpop.trf.xlu0
        %v580 = vpop.trf.xlu0
        %589 = vrot.lane.b32.xlu0 %v434, 112
        %v590 = vpop.permute.xlu0 %589
        %591 = vrot.lane.b32.xlu0 %v436, 112
        %v592 = vpop.permute.xlu0 %591
        %593 = vrot.lane.b32.xlu0 %v439, 112
        %v594 = vpop.permute.xlu0 %593
        %595 = vrot.lane.b32.xlu0 %v441, 112
        %v596 = vpop.permute.xlu0 %595
        %597 = vrot.lane.b32.xlu0 %v444, 112
        %v598 = vpop.permute.xlu0 %597
        %599 = vrot.lane.b32.xlu0 %v446, 112
        %v600 = vpop.permute.xlu0 %599
        %601 = vrot.lane.b32.xlu0 %v449, 112
        %v602 = vpop.permute.xlu0 %601
        %603 = vrot.lane.b32.xlu0 %v451, 112
        %v604 = vpop.permute.xlu0 %603
        %613 = vxpose.xlu0.b32.start [1/16] %v590, 128
        %614 = vxpose.xlu0.b32.cont [2/16] %v592, 128
        %615 = vxpose.xlu0.b32.cont [3/16] 0.0, 128
        %616 = vxpose.xlu0.b32.cont [4/16] 0.0, 128
        %617 = vxpose.xlu0.b32.cont [5/16] 0.0, 128
        %618 = vxpose.xlu0.b32.cont [6/16] 0.0, 128
        %619 = vxpose.xlu0.b32.cont [7/16] 0.0, 128
        %620 = vxpose.xlu0.b32.cont [8/16] 0.0, 128
        %621 = vxpose.xlu0.b32.cont [9/16] 0.0, 128
        %622 = vxpose.xlu0.b32.cont [10/16] 0.0, 128
        %623 = vxpose.xlu0.b32.cont [11/16] 0.0, 128
        %624 = vxpose.xlu0.b32.cont [12/16] 0.0, 128
        %625 = vxpose.xlu0.b32.cont [13/16] 0.0, 128
        %626 = vxpose.xlu0.b32.cont [14/16] 0.0, 128
        %627 = vxpose.xlu0.b32.cont [15/16] 0.0, 128
        %628 = vxpose.xlu0.b32.end [16/16] 0.0, 128
        %v629 = vpop.trf.xlu0
        %v630 = vpop.trf.xlu0
        %v631 = vpop.trf.xlu0
        %v632 = vpop.trf.xlu0
        %v633 = vpop.trf.xlu0
        %v634 = vpop.trf.xlu0
        %v635 = vpop.trf.xlu0
        %v636 = vpop.trf.xlu0
        %v637 = vpop.trf.xlu0
        %v638 = vpop.trf.xlu0
        %v639 = vpop.trf.xlu0
        %v640 = vpop.trf.xlu0
        %v641 = vpop.trf.xlu0
        %v642 = vpop.trf.xlu0
        %v643 = vpop.trf.xlu0
        %v644 = vpop.trf.xlu0
        %645 = vxpose.xlu0.b32.start [1/16] %v594, 128
        %646 = vxpose.xlu0.b32.cont [2/16] %v596, 128
        %647 = vxpose.xlu0.b32.cont [3/16] 0.0, 128
        %648 = vxpose.xlu0.b32.cont [4/16] 0.0, 128
        %649 = vxpose.xlu0.b32.cont [5/16] 0.0, 128
        %650 = vxpose.xlu0.b32.cont [6/16] 0.0, 128
        %651 = vxpose.xlu0.b32.cont [7/16] 0.0, 128
        %652 = vxpose.xlu0.b32.cont [8/16] 0.0, 128
        %653 = vxpose.xlu0.b32.cont [9/16] 0.0, 128
        %654 = vxpose.xlu0.b32.cont [10/16] 0.0, 128
        %655 = vxpose.xlu0.b32.cont [11/16] 0.0, 128
        %656 = vxpose.xlu0.b32.cont [12/16] 0.0, 128
        %657 = vxpose.xlu0.b32.cont [13/16] 0.0, 128
        %658 = vxpose.xlu0.b32.cont [14/16] 0.0, 128
        %659 = vxpose.xlu0.b32.cont [15/16] 0.0, 128
        %660 = vxpose.xlu0.b32.end [16/16] 0.0, 128
        %v661 = vpop.trf.xlu0
        %v662 = vpop.trf.xlu0
        %v663 = vpop.trf.xlu0
        %v664 = vpop.trf.xlu0
        %v665 = vpop.trf.xlu0
        %v666 = vpop.trf.xlu0
        %v667 = vpop.trf.xlu0
        %v668 = vpop.trf.xlu0
        %v669 = vpop.trf.xlu0
        %v670 = vpop.trf.xlu0
        %v671 = vpop.trf.xlu0
        %v672 = vpop.trf.xlu0
        %v673 = vpop.trf.xlu0
        %v674 = vpop.trf.xlu0
        %v675 = vpop.trf.xlu0
        %v676 = vpop.trf.xlu0
        %677 = vxpose.xlu0.b32.start [1/16] %v598, 128
        %678 = vxpose.xlu0.b32.cont [2/16] %v600, 128
        %679 = vxpose.xlu0.b32.cont [3/16] 0.0, 128
        %680 = vxpose.xlu0.b32.cont [4/16] 0.0, 128
        %681 = vxpose.xlu0.b32.cont [5/16] 0.0, 128
        %682 = vxpose.xlu0.b32.cont [6/16] 0.0, 128
        %683 = vxpose.xlu0.b32.cont [7/16] 0.0, 128
        %684 = vxpose.xlu0.b32.cont [8/16] 0.0, 128
        %685 = vxpose.xlu0.b32.cont [9/16] 0.0, 128
        %686 = vxpose.xlu0.b32.cont [10/16] 0.0, 128
        %687 = vxpose.xlu0.b32.cont [11/16] 0.0, 128
        %688 = vxpose.xlu0.b32.cont [12/16] 0.0, 128
        %689 = vxpose.xlu0.b32.cont [13/16] 0.0, 128
        %690 = vxpose.xlu0.b32.cont [14/16] 0.0, 128
        %691 = vxpose.xlu0.b32.cont [15/16] 0.0, 128
        %692 = vxpose.xlu0.b32.end [16/16] 0.0, 128
        %v693 = vpop.trf.xlu0
        %v694 = vpop.trf.xlu0
        %v695 = vpop.trf.xlu0
        %v696 = vpop.trf.xlu0
        %v697 = vpop.trf.xlu0
        %v698 = vpop.trf.xlu0
        %v699 = vpop.trf.xlu0
        %v700 = vpop.trf.xlu0
        %v701 = vpop.trf.xlu0
        %v702 = vpop.trf.xlu0
        %v703 = vpop.trf.xlu0
        %v704 = vpop.trf.xlu0
        %v705 = vpop.trf.xlu0
        %v706 = vpop.trf.xlu0
        %v707 = vpop.trf.xlu0
        %v708 = vpop.trf.xlu0
        %709 = vxpose.xlu0.b32.start [1/16] %v602, 128
        %710 = vxpose.xlu0.b32.cont [2/16] %v604, 128
        %711 = vxpose.xlu0.b32.cont [3/16] 0.0, 128
        %712 = vxpose.xlu0.b32.cont [4/16] 0.0, 128
        %713 = vxpose.xlu0.b32.cont [5/16] 0.0, 128
        %714 = vxpose.xlu0.b32.cont [6/16] 0.0, 128
        %715 = vxpose.xlu0.b32.cont [7/16] 0.0, 128
        %716 = vxpose.xlu0.b32.cont [8/16] 0.0, 128
        %717 = vxpose.xlu0.b32.cont [9/16] 0.0, 128
        %718 = vxpose.xlu0.b32.cont [10/16] 0.0, 128
        %719 = vxpose.xlu0.b32.cont [11/16] 0.0, 128
        %720 = vxpose.xlu0.b32.cont [12/16] 0.0, 128
        %721 = vxpose.xlu0.b32.cont [13/16] 0.0, 128
        %722 = vxpose.xlu0.b32.cont [14/16] 0.0, 128
        %723 = vxpose.xlu0.b32.cont [15/16] 0.0, 128
        %724 = vxpose.xlu0.b32.end [16/16] 0.0, 128
        %v725 = vpop.trf.xlu0
        %v726 = vpop.trf.xlu0
        %v727 = vpop.trf.xlu0
        %v728 = vpop.trf.xlu0
        %v729 = vpop.trf.xlu0
        %v730 = vpop.trf.xlu0
        %v731 = vpop.trf.xlu0
        %v732 = vpop.trf.xlu0
        %v733 = vpop.trf.xlu0
        %v734 = vpop.trf.xlu0
        %v735 = vpop.trf.xlu0
        %v736 = vpop.trf.xlu0
        %v737 = vpop.trf.xlu0
        %v738 = vpop.trf.xlu0
        %v739 = vpop.trf.xlu0
        %v740 = vpop.trf.xlu0
        %749 = vrot.lane.b32.xlu0 %v629, 16
        %v750 = vpop.permute.xlu0 %749
        %751 = vrot.lane.b32.xlu0 %v630, 16
        %v752 = vpop.permute.xlu0 %751
        %753 = vrot.lane.b32.xlu0 %v661, 16
        %v754 = vpop.permute.xlu0 %753
        %755 = vrot.lane.b32.xlu0 %v662, 16
        %v756 = vpop.permute.xlu0 %755
        %757 = vrot.lane.b32.xlu0 %v693, 16
        %v758 = vpop.permute.xlu0 %757
        %759 = vrot.lane.b32.xlu0 %v694, 16
        %v760 = vpop.permute.xlu0 %759
        %761 = vrot.lane.b32.xlu0 %v725, 16
        %v762 = vpop.permute.xlu0 %761
        %763 = vrot.lane.b32.xlu0 %v726, 16
        %v764 = vpop.permute.xlu0 %763
        %v773 = vsel %vm411, %v469, %v750
        %v774 = vsel %vm411, %v470, %v752
        %v775 = vsel %vm411, %v501, %v754
        %v776 = vsel %vm411, %v502, %v756
        %v777 = vsel %vm411, %v533, %v758
        %v778 = vsel %vm411, %v534, %v760
        %v779 = vsel %vm411, %v565, %v762
        %v780 = vsel %vm411, %v566, %v764
        %v781 = vpack.c.bf16 %v774, %v773
        %v782 = vpack.c.bf16 %v776, %v775
        %v783 = vpack.c.bf16 %v778, %v777
        %v784 = vpack.c.bf16 %v780, %v779
        %v785 = vld [vmem:[%s4] sm:$0xf]
        %v786 = vld [vmem:[%s4 + $0x4] sm:$0xf]
        %v787 = vld [vmem:[%s4 + $0x8] sm:$0xf]
        %v788 = vld [vmem:[%s4 + $0xc] sm:$0xf]
        %v793 = vunpack.c.l.b16 %v785
        %v794 = vunpack.c.l.b16 %v786
        %v795 = vunpack.c.l.b16 %v787
        %v796 = vunpack.c.l.b16 %v788
        %v797 = vpack.c.b16 %v794, %v793
        %v798 = vpack.c.b16 %v796, %v795
        %vm801 = vcmask 261120
        %v803 = vsel %vm801, %v781, 0
        %v806 = vsel %vm801, %v782, 0
        %v809 = vsel %vm801, %v783, 0
        %v812 = vsel %vm801, %v784, 0
        %814 = vmatpush.bf16.msra.mxu0 0
        %815 = vmatpush.bf16.msra.mxu0 0
        %816 = vmatpush.bf16.msra.mxu0 0
        %817 = vmatpush.bf16.msra.mxu0 0
        %818 = vmatpush.bf16.msra.mxu0 0
        %819 = vmatpush.bf16.msra.mxu0 0
        %820 = vmatpush.bf16.msra.mxu0 %v798
        %821 = vmatpush.bf16.msra.mxu0 %v797
        %822 = vmatmul.bf16.gmra.mxu0 %v803
        %v823 = vpop.f32.mrf.mxu0
        %v824 = vadd.f32 0.0, %v823
        %v825 = vpop.f32.mrf.mxu0
        %v826 = vadd.f32 0.0, %v825
        %827 = vmatmul.bf16.gmra.mxu0 %v806
        %v828 = vpop.f32.mrf.mxu0
        %v829 = vadd.f32 0.0, %v828
        %v830 = vpop.f32.mrf.mxu0
        %v831 = vadd.f32 0.0, %v830
        %832 = vmatmul.bf16.gmra.mxu0 %v809
        %v833 = vpop.f32.mrf.mxu0
        %v834 = vadd.f32 0.0, %v833
        %v835 = vpop.f32.mrf.mxu0
        %v836 = vadd.f32 0.0, %v835
        %837 = vmatmul.bf16.gmra.mxu0 %v812
        %v838 = vpop.f32.mrf.mxu0
        %v839 = vadd.f32 0.0, %v838
        %v840 = vpop.f32.mrf.mxu0
        %v841 = vadd.f32 0.0, %v840
        %842 = vdwg.mxu0
        %v843 = vld [vmem:[#allocation5] sm:$0xff]
        %v844 = vld [vmem:[#allocation5 + $0x8] sm:$0xff]
        %v845 = vld [vmem:[#allocation5 + $0x10] sm:$0xff]
        %v846 = vld [vmem:[#allocation5 + $0x18] sm:$0xff]
        %v847 = vld [vmem:[#allocation5 + $0x20] sm:$0xff]
        %v848 = vld [vmem:[#allocation5 + $0x28] sm:$0xff]
        %v849 = vld [vmem:[#allocation5 + $0x30] sm:$0xff]
        %v850 = vld [vmem:[#allocation5 + $0x38] sm:$0xff]
        %v851 = vld [vmem:[#allocation7] sm:$0xff]
        %v852 = vld [vmem:[#allocation7 + $0x8] sm:$0xff]
        %v853 = vld [vmem:[#allocation7 + $0x10] sm:$0xff]
        %v854 = vld [vmem:[#allocation7 + $0x18] sm:$0xff]
        %v855 = vld [vmem:[#allocation7 + $0x20] sm:$0xff]
        %v856 = vld [vmem:[#allocation7 + $0x28] sm:$0xff]
        %v857 = vld [vmem:[#allocation7 + $0x30] sm:$0xff]
        %v858 = vld [vmem:[#allocation7 + $0x38] sm:$0xff]
        %v859 = vmul.f32 %v824, %v843
        %v860 = vmul.f32 %v826, %v844
        %v861 = vmul.f32 %v829, %v845
        %v862 = vmul.f32 %v831, %v846
        %v863 = vmul.f32 %v834, %v847
        %v864 = vmul.f32 %v836, %v848
        %v865 = vmul.f32 %v839, %v849
        %v866 = vmul.f32 %v841, %v850
        %875 = vrot.lane.b32.xlu0 %v851, 16
        %v876 = vpop.permute.xlu0 %875
        %877 = vrot.lane.b32.xlu0 %v852, 16
        %v878 = vpop.permute.xlu0 %877
        %879 = vrot.lane.b32.xlu0 %v853, 16
        %v880 = vpop.permute.xlu0 %879
        %881 = vrot.lane.b32.xlu0 %v854, 16
        %v882 = vpop.permute.xlu0 %881
        %883 = vrot.lane.b32.xlu0 %v855, 16
        %v884 = vpop.permute.xlu0 %883
        %885 = vrot.lane.b32.xlu0 %v856, 16
        %v886 = vpop.permute.xlu0 %885
        %887 = vrot.lane.b32.xlu0 %v857, 16
        %v888 = vpop.permute.xlu0 %887
        %889 = vrot.lane.b32.xlu0 %v858, 16
        %v890 = vpop.permute.xlu0 %889
        %v899 = vmul.f32 %v824, %v876
        %v900 = vmul.f32 %v826, %v878
        %v901 = vmul.f32 %v829, %v880
        %v902 = vmul.f32 %v831, %v882
        %v903 = vmul.f32 %v834, %v884
        %v904 = vmul.f32 %v836, %v886
        %v905 = vmul.f32 %v839, %v888
        %v906 = vmul.f32 %v841, %v890
        %915 = vrot.lane.b32.xlu0 %v899, 112
        %v916 = vpop.permute.xlu0 %915
        %917 = vrot.lane.b32.xlu0 %v900, 112
        %v918 = vpop.permute.xlu0 %917
        %919 = vrot.lane.b32.xlu0 %v901, 112
        %v920 = vpop.permute.xlu0 %919
        %921 = vrot.lane.b32.xlu0 %v902, 112
        %v922 = vpop.permute.xlu0 %921
        %923 = vrot.lane.b32.xlu0 %v903, 112
        %v924 = vpop.permute.xlu0 %923
        %925 = vrot.lane.b32.xlu0 %v904, 112
        %v926 = vpop.permute.xlu0 %925
        %927 = vrot.lane.b32.xlu0 %v905, 112
        %v928 = vpop.permute.xlu0 %927
        %929 = vrot.lane.b32.xlu0 %v906, 112
        %v930 = vpop.permute.xlu0 %929
        %v939 = vsub.f32 %v859, %v916
        %v940 = vsub.f32 %v860, %v918
        %v941 = vsub.f32 %v861, %v920
        %v942 = vsub.f32 %v862, %v922
        %v943 = vsub.f32 %v863, %v924
        %v944 = vsub.f32 %v864, %v926
        %v945 = vsub.f32 %v865, %v928
        %v946 = vsub.f32 %v866, %v930
        %v947 = vmul.f32 %v824, %v851
        %v948 = vmul.f32 %v826, %v852
        %v949 = vmul.f32 %v829, %v853
        %v950 = vmul.f32 %v831, %v854
        %v951 = vmul.f32 %v834, %v855
        %v952 = vmul.f32 %v836, %v856
        %v953 = vmul.f32 %v839, %v857
        %v954 = vmul.f32 %v841, %v858
        %963 = vrot.lane.b32.xlu0 %v843, 16
        %v964 = vpop.permute.xlu0 %963
        %965 = vrot.lane.b32.xlu0 %v844, 16
        %v966 = vpop.permute.xlu0 %965
        %967 = vrot.lane.b32.xlu0 %v845, 16
        %v968 = vpop.permute.xlu0 %967
        %969 = vrot.lane.b32.xlu0 %v846, 16
        %v970 = vpop.permute.xlu0 %969
        %971 = vrot.lane.b32.xlu0 %v847, 16
        %v972 = vpop.permute.xlu0 %971
        %973 = vrot.lane.b32.xlu0 %v848, 16
        %v974 = vpop.permute.xlu0 %973
        %975 = vrot.lane.b32.xlu0 %v849, 16
        %v976 = vpop.permute.xlu0 %975
        %977 = vrot.lane.b32.xlu0 %v850, 16
        %v978 = vpop.permute.xlu0 %977
        %v987 = vmul.f32 %v824, %v964
        %v988 = vmul.f32 %v826, %v966
        %v989 = vmul.f32 %v829, %v968
        %v990 = vmul.f32 %v831, %v970
        %v991 = vmul.f32 %v834, %v972
        %v992 = vmul.f32 %v836, %v974
        %v993 = vmul.f32 %v839, %v976
        %v994 = vmul.f32 %v841, %v978
        %1003 = vrot.lane.b32.xlu0 %v987, 112
        %v1004 = vpop.permute.xlu0 %1003
        %1005 = vrot.lane.b32.xlu0 %v988, 112
        %v1006 = vpop.permute.xlu0 %1005
        %1007 = vrot.lane.b32.xlu0 %v989, 112
        %v1008 = vpop.permute.xlu0 %1007
        %1009 = vrot.lane.b32.xlu0 %v990, 112
        %v1010 = vpop.permute.xlu0 %1009
        %1011 = vrot.lane.b32.xlu0 %v991, 112
        %v1012 = vpop.permute.xlu0 %1011
        %1013 = vrot.lane.b32.xlu0 %v992, 112
        %v1014 = vpop.permute.xlu0 %1013
        %1015 = vrot.lane.b32.xlu0 %v993, 112
        %v1016 = vpop.permute.xlu0 %1015
        %1017 = vrot.lane.b32.xlu0 %v994, 112
        %v1018 = vpop.permute.xlu0 %1017
        %v1027 = vadd.f32 %v947, %v1004
        %v1028 = vadd.f32 %v948, %v1006
        %v1029 = vadd.f32 %v949, %v1008
        %v1030 = vadd.f32 %v950, %v1010
        %v1031 = vadd.f32 %v951, %v1012
        %v1032 = vadd.f32 %v952, %v1014
        %v1033 = vadd.f32 %v953, %v1016
        %v1034 = vadd.f32 %v954, %v1018
        %1043 = vrot.lane.b32.xlu0 %v1027, 16
        %v1044 = vpop.permute.xlu0 %1043
        %1045 = vrot.lane.b32.xlu0 %v1028, 16
        %v1046 = vpop.permute.xlu0 %1045
        %1047 = vrot.lane.b32.xlu0 %v1029, 16
        %v1048 = vpop.permute.xlu0 %1047
        %1049 = vrot.lane.b32.xlu0 %v1030, 16
        %v1050 = vpop.permute.xlu0 %1049
        %1051 = vrot.lane.b32.xlu0 %v1031, 16
        %v1052 = vpop.permute.xlu0 %1051
        %1053 = vrot.lane.b32.xlu0 %v1032, 16
        %v1054 = vpop.permute.xlu0 %1053
        %1055 = vrot.lane.b32.xlu0 %v1033, 16
        %v1056 = vpop.permute.xlu0 %1055
        %1057 = vrot.lane.b32.xlu0 %v1034, 16
        %v1058 = vpop.permute.xlu0 %1057
        %v1067 = vsel %vm411, %v939, %v1044
        %v1068 = vsel %vm411, %v940, %v1046
        %v1069 = vsel %vm411, %v941, %v1048
        %v1070 = vsel %vm411, %v942, %v1050
        %v1071 = vsel %vm411, %v943, %v1052
        %v1072 = vsel %vm411, %v944, %v1054
        %v1073 = vsel %vm411, %v945, %v1056
        %v1074 = vsel %vm411, %v946, %v1058
        %v1075 = vpack.c.bf16 %v1068, %v1067
        %v1076 = vpack.c.bf16 %v1070, %v1069
        %v1077 = vpack.c.bf16 %v1072, %v1071
        %v1078 = vpack.c.bf16 %v1074, %v1073
        %v1079 = vld [vmem:[#allocation8] sm:$0xf]
        %v1080 = vld [vmem:[#allocation8 + $0x4] sm:$0xf]
        %v1081 = vld [vmem:[#allocation8 + $0x8] sm:$0xf]
        %v1082 = vld [vmem:[#allocation8 + $0xc] sm:$0xf]
        %v1087 = vunpack.c.l.b16 %v1079
        %v1088 = vunpack.c.l.b16 %v1080
        %v1089 = vunpack.c.l.b16 %v1081
        %v1090 = vunpack.c.l.b16 %v1082
        %v1091 = vpack.c.b16 %v1088, %v1087
        %v1092 = vpack.c.b16 %v1090, %v1089
        %v1096 = vsel %vm801, %v1075, 0
        %v1099 = vsel %vm801, %v1076, 0
        %v1102 = vsel %vm801, %v1077, 0
        %v1105 = vsel %vm801, %v1078, 0
        %1107 = vmatpush.bf16.msra.mxu0 0
        %1108 = vmatpush.bf16.msra.mxu0 0
        %1109 = vmatpush.bf16.msra.mxu0 0
        %1110 = vmatpush.bf16.msra.mxu0 0
        %1111 = vmatpush.bf16.msra.mxu0 0
        %1112 = vmatpush.bf16.msra.mxu0 0
        %1113 = vmatpush.bf16.msra.mxu0 %v1092
        %1114 = vmatpush.bf16.msra.mxu0 %v1091
        %1115 = vmatmul.bf16.gmra.mxu0 %v1096
        %v1116 = vpop.f32.mrf.mxu0
        %v1117 = vadd.f32 0.0, %v1116
        %v1118 = vpop.f32.mrf.mxu0
        %v1119 = vadd.f32 0.0, %v1118
        %1120 = vmatmul.bf16.gmra.mxu0 %v1099
        %v1121 = vpop.f32.mrf.mxu0
        %v1122 = vadd.f32 0.0, %v1121
        %v1123 = vpop.f32.mrf.mxu0
        %v1124 = vadd.f32 0.0, %v1123
        %1125 = vmatmul.bf16.gmra.mxu0 %v1102
        %v1126 = vpop.f32.mrf.mxu0
        %v1127 = vadd.f32 0.0, %v1126
        %v1128 = vpop.f32.mrf.mxu0
        %v1129 = vadd.f32 0.0, %v1128
        %1130 = vmatmul.bf16.gmra.mxu0 %v1105
        %v1131 = vpop.f32.mrf.mxu0
        %v1132 = vadd.f32 0.0, %v1131
        %v1133 = vpop.f32.mrf.mxu0
        %v1134 = vadd.f32 0.0, %v1133
        %1135 = vdwg.mxu0
        %1136 = vxpose.xlu0.b32.start [1/16] %v1117, 128
        %1137 = vxpose.xlu0.b32.cont [2/16] %v1119, 128
        %1138 = vxpose.xlu0.b32.cont [3/16] 0.0, 128
        %1139 = vxpose.xlu0.b32.cont [4/16] 0.0, 128
        %1140 = vxpose.xlu0.b32.cont [5/16] 0.0, 128
        %1141 = vxpose.xlu0.b32.cont [6/16] 0.0, 128
        %1142 = vxpose.xlu0.b32.cont [7/16] 0.0, 128
        %1143 = vxpose.xlu0.b32.cont [8/16] 0.0, 128
        %1144 = vxpose.xlu0.b32.cont [9/16] 0.0, 128
        %1145 = vxpose.xlu0.b32.cont [10/16] 0.0, 128
        %1146 = vxpose.xlu0.b32.cont [11/16] 0.0, 128
        %1147 = vxpose.xlu0.b32.cont [12/16] 0.0, 128
        %1148 = vxpose.xlu0.b32.cont [13/16] 0.0, 128
        %1149 = vxpose.xlu0.b32.cont [14/16] 0.0, 128
        %1150 = vxpose.xlu0.b32.cont [15/16] 0.0, 128
        %1151 = vxpose.xlu0.b32.end [16/16] 0.0, 128
        %v1152 = vpop.trf.xlu0
        %v1153 = vpop.trf.xlu0
        %v1154 = vpop.trf.xlu0
        %v1155 = vpop.trf.xlu0
        %v1156 = vpop.trf.xlu0
        %v1157 = vpop.trf.xlu0
        %v1158 = vpop.trf.xlu0
        %v1159 = vpop.trf.xlu0
        %v1160 = vpop.trf.xlu0
        %v1161 = vpop.trf.xlu0
        %v1162 = vpop.trf.xlu0
        %v1163 = vpop.trf.xlu0
        %v1164 = vpop.trf.xlu0
        %v1165 = vpop.trf.xlu0
        %v1166 = vpop.trf.xlu0
        %v1167 = vpop.trf.xlu0
        %1168 = vxpose.xlu0.b32.start [1/16] %v1122, 128
        %1169 = vxpose.xlu0.b32.cont [2/16] %v1124, 128
        %1170 = vxpose.xlu0.b32.cont [3/16] 0.0, 128
        %1171 = vxpose.xlu0.b32.cont [4/16] 0.0, 128
        %1172 = vxpose.xlu0.b32.cont [5/16] 0.0, 128
        %1173 = vxpose.xlu0.b32.cont [6/16] 0.0, 128
        %1174 = vxpose.xlu0.b32.cont [7/16] 0.0, 128
        %1175 = vxpose.xlu0.b32.cont [8/16] 0.0, 128
        %1176 = vxpose.xlu0.b32.cont [9/16] 0.0, 128
        %1177 = vxpose.xlu0.b32.cont [10/16] 0.0, 128
        %1178 = vxpose.xlu0.b32.cont [11/16] 0.0, 128
        %1179 = vxpose.xlu0.b32.cont [12/16] 0.0, 128
        %1180 = vxpose.xlu0.b32.cont [13/16] 0.0, 128
        %1181 = vxpose.xlu0.b32.cont [14/16] 0.0, 128
        %1182 = vxpose.xlu0.b32.cont [15/16] 0.0, 128
        %1183 = vxpose.xlu0.b32.end [16/16] 0.0, 128
        %v1184 = vpop.trf.xlu0
        %v1185 = vpop.trf.xlu0
        %v1186 = vpop.trf.xlu0
        %v1187 = vpop.trf.xlu0
        %v1188 = vpop.trf.xlu0
        %v1189 = vpop.trf.xlu0
        %v1190 = vpop.trf.xlu0
        %v1191 = vpop.trf.xlu0
        %v1192 = vpop.trf.xlu0
        %v1193 = vpop.trf.xlu0
        %v1194 = vpop.trf.xlu0
        %v1195 = vpop.trf.xlu0
        %v1196 = vpop.trf.xlu0
        %v1197 = vpop.trf.xlu0
        %v1198 = vpop.trf.xlu0
        %v1199 = vpop.trf.xlu0
        %1200 = vxpose.xlu0.b32.start [1/16] %v1127, 128
        %1201 = vxpose.xlu0.b32.cont [2/16] %v1129, 128
        %1202 = vxpose.xlu0.b32.cont [3/16] 0.0, 128
        %1203 = vxpose.xlu0.b32.cont [4/16] 0.0, 128
        %1204 = vxpose.xlu0.b32.cont [5/16] 0.0, 128
        %1205 = vxpose.xlu0.b32.cont [6/16] 0.0, 128
        %1206 = vxpose.xlu0.b32.cont [7/16] 0.0, 128
        %1207 = vxpose.xlu0.b32.cont [8/16] 0.0, 128
        %1208 = vxpose.xlu0.b32.cont [9/16] 0.0, 128
        %1209 = vxpose.xlu0.b32.cont [10/16] 0.0, 128
        %1210 = vxpose.xlu0.b32.cont [11/16] 0.0, 128
        %1211 = vxpose.xlu0.b32.cont [12/16] 0.0, 128
        %1212 = vxpose.xlu0.b32.cont [13/16] 0.0, 128
        %1213 = vxpose.xlu0.b32.cont [14/16] 0.0, 128
        %1214 = vxpose.xlu0.b32.cont [15/16] 0.0, 128
        %1215 = vxpose.xlu0.b32.end [16/16] 0.0, 128
        %v1216 = vpop.trf.xlu0
        %v1217 = vpop.trf.xlu0
        %v1218 = vpop.trf.xlu0
        %v1219 = vpop.trf.xlu0
        %v1220 = vpop.trf.xlu0
        %v1221 = vpop.trf.xlu0
        %v1222 = vpop.trf.xlu0
        %v1223 = vpop.trf.xlu0
        %v1224 = vpop.trf.xlu0
        %v1225 = vpop.trf.xlu0
        %v1226 = vpop.trf.xlu0
        %v1227 = vpop.trf.xlu0
        %v1228 = vpop.trf.xlu0
        %v1229 = vpop.trf.xlu0
        %v1230 = vpop.trf.xlu0
        %v1231 = vpop.trf.xlu0
        %1232 = vxpose.xlu0.b32.start [1/16] %v1132, 128
        %1233 = vxpose.xlu0.b32.cont [2/16] %v1134, 128
        %1234 = vxpose.xlu0.b32.cont [3/16] 0.0, 128
        %1235 = vxpose.xlu0.b32.cont [4/16] 0.0, 128
        %1236 = vxpose.xlu0.b32.cont [5/16] 0.0, 128
        %1237 = vxpose.xlu0.b32.cont [6/16] 0.0, 128
        %1238 = vxpose.xlu0.b32.cont [7/16] 0.0, 128
        %1239 = vxpose.xlu0.b32.cont [8/16] 0.0, 128
        %1240 = vxpose.xlu0.b32.cont [9/16] 0.0, 128
        %1241 = vxpose.xlu0.b32.cont [10/16] 0.0, 128
        %1242 = vxpose.xlu0.b32.cont [11/16] 0.0, 128
        %1243 = vxpose.xlu0.b32.cont [12/16] 0.0, 128
        %1244 = vxpose.xlu0.b32.cont [13/16] 0.0, 128
        %1245 = vxpose.xlu0.b32.cont [14/16] 0.0, 128
        %1246 = vxpose.xlu0.b32.cont [15/16] 0.0, 128
        %1247 = vxpose.xlu0.b32.end [16/16] 0.0, 128
        %v1248 = vpop.trf.xlu0
        %v1249 = vpop.trf.xlu0
        %v1250 = vpop.trf.xlu0
        %v1251 = vpop.trf.xlu0
        %v1252 = vpop.trf.xlu0
        %v1253 = vpop.trf.xlu0
        %v1254 = vpop.trf.xlu0
        %v1255 = vpop.trf.xlu0
        %v1256 = vpop.trf.xlu0
        %v1257 = vpop.trf.xlu0
        %v1258 = vpop.trf.xlu0
        %v1259 = vpop.trf.xlu0
        %v1260 = vpop.trf.xlu0
        %v1261 = vpop.trf.xlu0
        %v1262 = vpop.trf.xlu0
        %v1263 = vpop.trf.xlu0
        %1272 = vrot.lane.b32.xlu0 %v1117, 112
        %v1273 = vpop.permute.xlu0 %1272
        %1274 = vrot.lane.b32.xlu0 %v1119, 112
        %v1275 = vpop.permute.xlu0 %1274
        %1276 = vrot.lane.b32.xlu0 %v1122, 112
        %v1277 = vpop.permute.xlu0 %1276
        %1278 = vrot.lane.b32.xlu0 %v1124, 112
        %v1279 = vpop.permute.xlu0 %1278
        %1280 = vrot.lane.b32.xlu0 %v1127, 112
        %v1281 = vpop.permute.xlu0 %1280
        %1282 = vrot.lane.b32.xlu0 %v1129, 112
        %v1283 = vpop.permute.xlu0 %1282
        %1284 = vrot.lane.b32.xlu0 %v1132, 112
        %v1285 = vpop.permute.xlu0 %1284
        %1286 = vrot.lane.b32.xlu0 %v1134, 112
        %v1287 = vpop.permute.xlu0 %1286
        %1296 = vxpose.xlu0.b32.start [1/16] %v1273, 128
        %1297 = vxpose.xlu0.b32.cont [2/16] %v1275, 128
        %1298 = vxpose.xlu0.b32.cont [3/16] 0.0, 128
        %1299 = vxpose.xlu0.b32.cont [4/16] 0.0, 128
        %1300 = vxpose.xlu0.b32.cont [5/16] 0.0, 128
        %1301 = vxpose.xlu0.b32.cont [6/16] 0.0, 128
        %1302 = vxpose.xlu0.b32.cont [7/16] 0.0, 128
        %1303 = vxpose.xlu0.b32.cont [8/16] 0.0, 128
        %1304 = vxpose.xlu0.b32.cont [9/16] 0.0, 128
        %1305 = vxpose.xlu0.b32.cont [10/16] 0.0, 128
        %1306 = vxpose.xlu0.b32.cont [11/16] 0.0, 128
        %1307 = vxpose.xlu0.b32.cont [12/16] 0.0, 128
        %1308 = vxpose.xlu0.b32.cont [13/16] 0.0, 128
        %1309 = vxpose.xlu0.b32.cont [14/16] 0.0, 128
        %1310 = vxpose.xlu0.b32.cont [15/16] 0.0, 128
        %1311 = vxpose.xlu0.b32.end [16/16] 0.0, 128
        %v1312 = vpop.trf.xlu0
        %v1313 = vpop.trf.xlu0
        %v1314 = vpop.trf.xlu0
        %v1315 = vpop.trf.xlu0
        %v1316 = vpop.trf.xlu0
        %v1317 = vpop.trf.xlu0
        %v1318 = vpop.trf.xlu0
        %v1319 = vpop.trf.xlu0
        %v1320 = vpop.trf.xlu0
        %v1321 = vpop.trf.xlu0
        %v1322 = vpop.trf.xlu0
        %v1323 = vpop.trf.xlu0
        %v1324 = vpop.trf.xlu0
        %v1325 = vpop.trf.xlu0
        %v1326 = vpop.trf.xlu0
        %v1327 = vpop.trf.xlu0
        %1328 = vxpose.xlu0.b32.start [1/16] %v1277, 128
        %1329 = vxpose.xlu0.b32.cont [2/16] %v1279, 128
        %1330 = vxpose.xlu0.b32.cont [3/16] 0.0, 128
        %1331 = vxpose.xlu0.b32.cont [4/16] 0.0, 128
        %1332 = vxpose.xlu0.b32.cont [5/16] 0.0, 128
        %1333 = vxpose.xlu0.b32.cont [6/16] 0.0, 128
        %1334 = vxpose.xlu0.b32.cont [7/16] 0.0, 128
        %1335 = vxpose.xlu0.b32.cont [8/16] 0.0, 128
        %1336 = vxpose.xlu0.b32.cont [9/16] 0.0, 128
        %1337 = vxpose.xlu0.b32.cont [10/16] 0.0, 128
        %1338 = vxpose.xlu0.b32.cont [11/16] 0.0, 128
        %1339 = vxpose.xlu0.b32.cont [12/16] 0.0, 128
        %1340 = vxpose.xlu0.b32.cont [13/16] 0.0, 128
        %1341 = vxpose.xlu0.b32.cont [14/16] 0.0, 128
        %1342 = vxpose.xlu0.b32.cont [15/16] 0.0, 128
        %1343 = vxpose.xlu0.b32.end [16/16] 0.0, 128
        %v1344 = vpop.trf.xlu0
        %v1345 = vpop.trf.xlu0
        %v1346 = vpop.trf.xlu0
        %v1347 = vpop.trf.xlu0
        %v1348 = vpop.trf.xlu0
        %v1349 = vpop.trf.xlu0
        %v1350 = vpop.trf.xlu0
        %v1351 = vpop.trf.xlu0
        %v1352 = vpop.trf.xlu0
        %v1353 = vpop.trf.xlu0
        %v1354 = vpop.trf.xlu0
        %v1355 = vpop.trf.xlu0
        %v1356 = vpop.trf.xlu0
        %v1357 = vpop.trf.xlu0
        %v1358 = vpop.trf.xlu0
        %v1359 = vpop.trf.xlu0
        %1360 = vxpose.xlu0.b32.start [1/16] %v1281, 128
        %1361 = vxpose.xlu0.b32.cont [2/16] %v1283, 128
        %1362 = vxpose.xlu0.b32.cont [3/16] 0.0, 128
        %1363 = vxpose.xlu0.b32.cont [4/16] 0.0, 128
        %1364 = vxpose.xlu0.b32.cont [5/16] 0.0, 128
        %1365 = vxpose.xlu0.b32.cont [6/16] 0.0, 128
        %1366 = vxpose.xlu0.b32.cont [7/16] 0.0, 128
        %1367 = vxpose.xlu0.b32.cont [8/16] 0.0, 128
        %1368 = vxpose.xlu0.b32.cont [9/16] 0.0, 128
        %1369 = vxpose.xlu0.b32.cont [10/16] 0.0, 128
        %1370 = vxpose.xlu0.b32.cont [11/16] 0.0, 128
        %1371 = vxpose.xlu0.b32.cont [12/16] 0.0, 128
        %1372 = vxpose.xlu0.b32.cont [13/16] 0.0, 128
        %1373 = vxpose.xlu0.b32.cont [14/16] 0.0, 128
        %1374 = vxpose.xlu0.b32.cont [15/16] 0.0, 128
        %1375 = vxpose.xlu0.b32.end [16/16] 0.0, 128
        %v1376 = vpop.trf.xlu0
        %v1377 = vpop.trf.xlu0
        %v1378 = vpop.trf.xlu0
        %v1379 = vpop.trf.xlu0
        %v1380 = vpop.trf.xlu0
        %v1381 = vpop.trf.xlu0
        %v1382 = vpop.trf.xlu0
        %v1383 = vpop.trf.xlu0
        %v1384 = vpop.trf.xlu0
        %v1385 = vpop.trf.xlu0
        %v1386 = vpop.trf.xlu0
        %v1387 = vpop.trf.xlu0
        %v1388 = vpop.trf.xlu0
        %v1389 = vpop.trf.xlu0
        %v1390 = vpop.trf.xlu0
        %v1391 = vpop.trf.xlu0
        %1392 = vxpose.xlu0.b32.start [1/16] %v1285, 128
        %1393 = vxpose.xlu0.b32.cont [2/16] %v1287, 128
        %1394 = vxpose.xlu0.b32.cont [3/16] 0.0, 128
        %1395 = vxpose.xlu0.b32.cont [4/16] 0.0, 128
        %1396 = vxpose.xlu0.b32.cont [5/16] 0.0, 128
        %1397 = vxpose.xlu0.b32.cont [6/16] 0.0, 128
        %1398 = vxpose.xlu0.b32.cont [7/16] 0.0, 128
        %1399 = vxpose.xlu0.b32.cont [8/16] 0.0, 128
        %1400 = vxpose.xlu0.b32.cont [9/16] 0.0, 128
        %1401 = vxpose.xlu0.b32.cont [10/16] 0.0, 128
        %1402 = vxpose.xlu0.b32.cont [11/16] 0.0, 128
        %1403 = vxpose.xlu0.b32.cont [12/16] 0.0, 128
        %1404 = vxpose.xlu0.b32.cont [13/16] 0.0, 128
        %1405 = vxpose.xlu0.b32.cont [14/16] 0.0, 128
        %1406 = vxpose.xlu0.b32.cont [15/16] 0.0, 128
        %1407 = vxpose.xlu0.b32.end [16/16] 0.0, 128
        %v1408 = vpop.trf.xlu0
        %v1409 = vpop.trf.xlu0
        %v1410 = vpop.trf.xlu0
        %v1411 = vpop.trf.xlu0
        %v1412 = vpop.trf.xlu0
        %v1413 = vpop.trf.xlu0
        %v1414 = vpop.trf.xlu0
        %v1415 = vpop.trf.xlu0
        %v1416 = vpop.trf.xlu0
        %v1417 = vpop.trf.xlu0
        %v1418 = vpop.trf.xlu0
        %v1419 = vpop.trf.xlu0
        %v1420 = vpop.trf.xlu0
        %v1421 = vpop.trf.xlu0
        %v1422 = vpop.trf.xlu0
        %v1423 = vpop.trf.xlu0
        %1432 = vrot.lane.b32.xlu0 %v1312, 16
        %v1433 = vpop.permute.xlu0 %1432
        %1434 = vrot.lane.b32.xlu0 %v1313, 16
        %v1435 = vpop.permute.xlu0 %1434
        %1436 = vrot.lane.b32.xlu0 %v1344, 16
        %v1437 = vpop.permute.xlu0 %1436
        %1438 = vrot.lane.b32.xlu0 %v1345, 16
        %v1439 = vpop.permute.xlu0 %1438
        %1440 = vrot.lane.b32.xlu0 %v1376, 16
        %v1441 = vpop.permute.xlu0 %1440
        %1442 = vrot.lane.b32.xlu0 %v1377, 16
        %v1443 = vpop.permute.xlu0 %1442
        %1444 = vrot.lane.b32.xlu0 %v1408, 16
        %v1445 = vpop.permute.xlu0 %1444
        %1446 = vrot.lane.b32.xlu0 %v1409, 16
        %v1447 = vpop.permute.xlu0 %1446
        %v1456 = vsel %vm411, %v1152, %v1433
        %v1457 = vsel %vm411, %v1153, %v1435
        %v1458 = vsel %vm411, %v1184, %v1437
        %v1459 = vsel %vm411, %v1185, %v1439
        %v1460 = vsel %vm411, %v1216, %v1441
        %v1461 = vsel %vm411, %v1217, %v1443
        %v1462 = vsel %vm411, %v1248, %v1445
        %v1463 = vsel %vm411, %v1249, %v1447
        %v1464 = vpack.c.bf16 %v1457, %v1456
        %v1465 = vpack.c.bf16 %v1459, %v1458
        %v1466 = vpack.c.bf16 %v1461, %v1460
        %v1467 = vpack.c.bf16 %v1463, %v1462
        %v1468 = vld [vmem:[%s6] sm:$0xf]
        %v1469 = vld [vmem:[%s6 + $0x4] sm:$0xf]
        %v1470 = vld [vmem:[%s6 + $0x8] sm:$0xf]
        %v1471 = vld [vmem:[%s6 + $0xc] sm:$0xf]
        %v1476 = vunpack.c.l.b16 %v1468
        %v1477 = vunpack.c.l.b16 %v1469
        %v1478 = vunpack.c.l.b16 %v1470
        %v1479 = vunpack.c.l.b16 %v1471
        %v1480 = vpack.c.b16 %v1477, %v1476
        %v1481 = vpack.c.b16 %v1479, %v1478
        %v1485 = vsel %vm801, %v1464, 0
        %v1488 = vsel %vm801, %v1465, 0
        %v1491 = vsel %vm801, %v1466, 0
        %v1494 = vsel %vm801, %v1467, 0
        %1496 = vmatpush.bf16.msra.mxu0 0
        %1497 = vmatpush.bf16.msra.mxu0 0
        %1498 = vmatpush.bf16.msra.mxu0 0
        %1499 = vmatpush.bf16.msra.mxu0 0
        %1500 = vmatpush.bf16.msra.mxu0 0
        %1501 = vmatpush.bf16.msra.mxu0 0
        %1502 = vmatpush.bf16.msra.mxu0 %v1481
        %1503 = vmatpush.bf16.msra.mxu0 %v1480
        %1504 = vmatmul.bf16.gmra.mxu0 %v1485
        %v1505 = vpop.f32.mrf.mxu0
        %v1506 = vadd.f32 0.0, %v1505
        %v1507 = vpop.f32.mrf.mxu0
        %v1508 = vadd.f32 0.0, %v1507
        %1509 = vmatmul.bf16.gmra.mxu0 %v1488
        %v1510 = vpop.f32.mrf.mxu0
        %v1511 = vadd.f32 0.0, %v1510
        %v1512 = vpop.f32.mrf.mxu0
        %v1513 = vadd.f32 0.0, %v1512
        %1514 = vmatmul.bf16.gmra.mxu0 %v1491
        %v1515 = vpop.f32.mrf.mxu0
        %v1516 = vadd.f32 0.0, %v1515
        %v1517 = vpop.f32.mrf.mxu0
        %v1518 = vadd.f32 0.0, %v1517
        %1519 = vmatmul.bf16.gmra.mxu0 %v1494
        %v1520 = vpop.f32.mrf.mxu0
        %v1521 = vadd.f32 0.0, %v1520
        %v1522 = vpop.f32.mrf.mxu0
        %v1523 = vadd.f32 0.0, %v1522
        %1524 = vdwg.mxu0
        %1525 = vst.msk [vmem:[%s385] sm:$0xff] %vm411, %v1506
        %1526 = vst.msk [vmem:[%s385 + $0x8] sm:$0xff] %vm411, %v1508
        %1527 = vst.msk [vmem:[%s385 + $0x10] sm:$0xff] %vm411, %v1511
        %1528 = vst.msk [vmem:[%s385 + $0x18] sm:$0xff] %vm411, %v1513
        %1529 = vst.msk [vmem:[%s385 + $0x20] sm:$0xff] %vm411, %v1516
        %1530 = vst.msk [vmem:[%s385 + $0x28] sm:$0xff] %vm411, %v1518
        %1531 = vst.msk [vmem:[%s385 + $0x30] sm:$0xff] %vm411, %v1521
        %1532 = vst.msk [vmem:[%s385 + $0x38] sm:$0xff] %vm411, %v1523
        %s1533 = sand.u32 %s212, 1
        %s1534 = scalar_lea.sflag [#allocation4], %s1533
        %s1535 = sand.u32 %s212, 1
        %s1536 = smul.addr %s1535, 64
        %s1537 = scalar_lea.vmem [#allocation10], %s1536
        // Predicated region
        $region65: #{tpu_custom_call.1} parent=47 // pred_check
          %p1538 = pneg %p222
        $region66: #{tpu_custom_call.1} parent=47 // pred_check_branch
          %1540 = sbr.rel (%p1538) target = $region68
        $region67: #{tpu_custom_call.1} parent=47 // pred_region
          %s1541 = smul.u32 4, %s30
          %1543 = vsyncadd %s1534, 0
          %s1544 = smul.addr %s1541, 2
          %s1545 = smul.addr %s31, 8
          %s1546 = sadd.s32 %s1544, %s1545
          %s1547 = smul.addr %s1546, 8
          %s1548 = scalar_lea.hbm %s7, %s1547
          %s1549 = sshll.u32 %s1537, 4
          %s1550 = int_to_ptr.vmem [resolvable:$true] %s1549
          %s1551 = sshll.u32 %s1548, 4
          %s1552 = int_to_ptr.hbm [resolvable:$true] %s1551
          %1557 = dma.vmem_to_hbm [thread:$0]  %s1550, 1024, %s1552, %s1534, 128, 128, 8
        $region68: #{tpu_custom_call.1} parent=47 // pred_fallthru
          _
      $region48: #{tpu_custom_call.1} parent=5 // pred_fallthru
        _
      %p1558 = scmp.le.s32.totalorder 2, %s21
      // Predicated region
      $region69: #{tpu_custom_call.1} parent=5 // pred_check
        %p1559 = pneg %p1558
      $region70: #{tpu_custom_call.1} parent=5 // pred_check_branch
        %1561 = sbr.rel (%p1559) target = $region72
      $region71: #{tpu_custom_call.1} parent=5 // pred_region
        %s1562 = ssub.s32 %s21, 2
        // Predicated region
        $region73: #{tpu_custom_call.1} parent=71 // pred_check
          %p1563 = pneg %p228
        $region74: #{tpu_custom_call.1} parent=71 // pred_check_branch
          %1565 = sbr.rel (%p1563) target = $region76
        $region75: #{tpu_custom_call.1} parent=71 // pred_region
          %s1566 = sand.u32 %s213, 1
          %s1567 = scalar_lea.sflag [#allocation4], %s1566
          %s1568 = sand.u32 %s213, 1
          %s1569 = smul.addr %s1568, 64
          %s1570 = scalar_lea.vmem [#allocation10], %s1569
          %1572 = dma.done %s1567, 1024
        $region76: #{tpu_custom_call.1} parent=71 // pred_fallthru
          _
      $region72: #{tpu_custom_call.1} parent=5 // pred_fallthru
        _
    $region6: #{tpu_custom_call.1} parent=1 // loop_footer
      %s25 = sadd.s32 1, %s21
    $region7: #{tpu_custom_call.1} parent=1 // loop_footer_branch
      %20 = sbr.rel target = $region3
    $region8: #{tpu_custom_call.1} parent=1 // loop_exit
      _
    %1573 = vsyncpa [#allocation3], 1
    %s1574 = scalar_lea.sflag [#allocation3], 1
    %1575 = vsyncpa %s1574, 1
    %1576 = vsyncpa [#allocation6], 1
    %1577 = vsyncpa [#allocation9], 1
    %1578 = vsyncpa [#allocation4], 1
    %s1579 = scalar_lea.sflag [#allocation4], 1
    %1580 = vsyncpa %s1579, 1

</llo_original>
